<compile_context>
chip_gen: v5e
topology: v5e:2x2
jax: 0.10.0
libtpu: 0.0.40
codegen_flags: <defaults>
</compile_context>

<pallas_src>
import jax
import jax.numpy as jnp
from jax import lax
from jax.experimental import pallas as pl
from jax.experimental.pallas import tpu as pltpu

_LN_EPS = 1e-5
_MIB = 1024 * 1024


def _fused_kernel(x_ref, gt_ref, gb_ref, bt_ref, bb_ref, wt_ref, wb_ref, o_ref):
    """Fused 2x2 merge + LayerNorm(4C) + Linear(4C -> 2C, no bias).

    x_ref : (tbh, 2, W2p, 2C)  raw activations; axis 1 is the intra-pair row
                               di, the last dim packs (dj, C)
    gt/gb : (1, 2C)            LN gamma, di=0 / di=1 channel halves
    bt/bb : (1, 2C)            LN beta halves
    wt/wb : (2C, 2C)           reduction-weight halves, rows permuted to the
                               kernel's (di, dj, C) channel order
    o_ref : (tbh, W2p, 2C)
    """
    tbh, _, w2, c2 = x_ref.shape
    m = tbh * w2
    inv_n = 1.0 / (2 * c2)

    # di=0 / di=1 halves of every merged row.  W2p % 8 == 0 always (wrapper
    # pads W), so the (tbh, W2p, 2C) -> (tbh*W2p, 2C) collapse is tile-aligned.
    top = x_ref[:, 0, :, :].astype(jnp.float32).reshape(m, c2)
    bot = x_ref[:, 1, :, :].astype(jnp.float32).reshape(m, c2)

    # Two-pass LayerNorm over the full 4C row: more stable than E[x^2]-E[x]^2
    # and free on this HBM-bound kernel (same VPU/XLU op count).
    mean = (jnp.sum(top, axis=-1, keepdims=True)
            + jnp.sum(bot, axis=-1, keepdims=True)) * inv_n
    ct = top - mean
    cb = bot - mean
    var = (jnp.sum(ct * ct, axis=-1, keepdims=True)
           + jnp.sum(cb * cb, axis=-1, keepdims=True)) * inv_n
    inv = lax.rsqrt(var + _LN_EPS)

    yt = ct * inv * gt_ref[...] + bt_ref[...]
    yb = cb * inv * gb_ref[...] + bb_ref[...]

    cdt = wt_ref.dtype  # bf16 MXU operands, f32 accumulation
    out = jnp.dot(yt.astype(cdt), wt_ref[...], preferred_element_type=jnp.float32)
    out = out + jnp.dot(yb.astype(cdt), wb_ref[...], preferred_element_type=jnp.float32)
    o_ref[...] = out.reshape(tbh, w2, -1).astype(o_ref.dtype)


def _vmem_capacity_bytes():
    try:
        cap = getattr(pltpu.get_tpu_info(), "vmem_capacity_bytes", None)
        if cap:
            return int(cap)
    except Exception:
        pass
    return 64 * _MIB  # conservative (v7x-sized) fallback


def _pick_tile(n, cap, prefer_even_steps):
    """Largest divisor of n that is <= cap.  On dual-TensorCore parts prefer a
    divisor giving an even number of grid steps (balanced cores), as long as
    it does not shrink the tile by more than 2x."""
    cap = max(1, min(n, cap))
    best = 1
    for d in range(cap, 0, -1):
        if n % d == 0:
            best = d
            break
    if prefer_even_steps and (n // best) % 2 == 1 and n % 2 == 0:
        for d in range(best, 0, -1):
            if n % d == 0 and (n // d) % 2 == 0:
                if 2 * d >= best:
                    best = d
                break
    return best


def patch_merging(x, H, W, gamma, beta, w_reduction, *,
                  matmul_dtype=jnp.bfloat16, single_buffer_params=True):
    """JAX/Pallas equivalent of PatchMerging.forward(x, H, W).

    x            : (B, L, C) with L == H*W  (f32 or bf16; bf16 halves HBM traffic)
    gamma, beta  : (4C,) LayerNorm parameters
    w_reduction  : (2C, 4C) nn.Linear weight (PyTorch convention, bias-free)
    returns      : (B, ceil(H/2)*ceil(W/2), 2C) in x.dtype
    """
    B, L, C = x.shape
    assert L == H * W, "input feature has wrong size"
    c4, c2 = 4 * C, 2 * C
    out_dtype = x.dtype
    in_bytes = jnp.dtype(x.dtype).itemsize
    out_bytes = jnp.dtype(out_dtype).itemsize
    w_bytes = jnp.dtype(matmul_dtype).itemsize

    # ---- spatial padding ----------------------------------------------------
    # Module semantics: pad H, W up to even.  Additionally pad W so that
    # W2p = Wp_pad/2 is a multiple of 8 (tile-aligned in-kernel reshape).  The
    # extra columns are whole 2x2 zero windows cropped from the output, so the
    # fused path covers every shape (no XLA-materialized merge fallback).
    Hp = H + (H % 2)
    Wp = W + (W % 2)
    H2, W2 = Hp // 2, Wp // 2
    W2p = ((W2 + 7) // 8) * 8
    Wp_pad = 2 * W2p

    x = x.reshape(B, H, W, C)
    if Hp != H or Wp_pad != W:
        x = jnp.pad(x, ((0, 0), (0, Hp - H), (0, Wp_pad - W), (0, 0)))

    xr = x.reshape(B * H2, 2, W2p, c2)                # free, contiguous reshape
    bh2 = B * H2

    # ---- parameter repack -----------------------------------------------------
    # PyTorch concat order [x0,x1,x2,x3] == (dj, di, C); the kernel's natural
    # order is (di, dj, C).  Permute once on the host and split into the
    # di=0 / di=1 halves so no in-kernel channel concat is needed.
    w_t = w_reduction.T                               # (4C, 2C): kernel does x @ W
    g_k = gamma.astype(jnp.float32).reshape(2, 2, C).transpose(1, 0, 2).reshape(c4)
    b_k = beta.astype(jnp.float32).reshape(2, 2, C).transpose(1, 0, 2).reshape(c4)
    w_k = (w_t.reshape(2, 2, C, c2).transpose(1, 0, 2, 3)
           .reshape(c4, c2).astype(matmul_dtype))
    gt, gb = g_k[:c2].reshape(1, c2), g_k[c2:].reshape(1, c2)
    bt, bb = b_k[:c2].reshape(1, c2), b_k[c2:].reshape(1, c2)
    wt, wb = w_k[:c2], w_k[c2:]

    # ---- generation-aware VMEM budget & tile size -----------------------------
    vmem_cap = _vmem_capacity_bytes()
    if vmem_cap >= 100 * _MIB:        # v5e / v6e: 128 MiB VMEM, 1 TensorCore/chip
        vmem_limit = 100 * _MIB
        multi_core = False
    else:                             # v7x: 64 MiB per TensorCore, 2 cores/chip
        vmem_limit = 48 * _MIB
        multi_core = True

    param_bufs = 1 if single_buffer_params else 2
    # Grid-invariant blocks: two (2C,2C) weight halves + four (1,2C) f32 params.
    fixed_bytes = param_bufs * (2 * c2 * c2 * w_bytes + 4 * c2 * 4)
    # TODO(synk): for very large C (fixed_bytes approaching the VMEM limit) the
    # weight should itself be tiled along K/N instead of kept fully resident.

    # Per bh-line bytes: double-buffered input & output blocks plus roughly two
    # live f32 copies of the 4C row for LN temporaries / the f32 accumulator.
    per_line = (2 * (2 * W2p * c2 * in_bytes)
                + 2 * (W2p * c2 * out_bytes)
                + W2p * c2 * 16)
    budget = max(2 * _MIB, min(vmem_limit, 48 * _MIB) - fixed_bytes - 4 * _MIB)
    tgt = max(1, budget // per_line)
    if multi_core and bh2 >= 2:
        tgt = min(tgt, bh2 // 2)      # >= 2 grid steps so both TensorCores get work
    tbh = _pick_tile(bh2, tgt, prefer_even_steps=multi_core)

    def _inv_spec(shape):
        # Grid-invariant parameter block.  Single-buffer it when requested:
        # it never changes (index_map always (0,0)), so double buffering only
        # wastes VMEM (matters at large C on v7x's 64 MiB).
        if single_buffer_params:
            return pl.BlockSpec(shape, lambda i: (0, 0),
                                pipeline_mode=pl.Buffered(1))
        return pl.BlockSpec(shape, lambda i: (0, 0))

    out = pl.pallas_call(
        _fused_kernel,
        out_shape=jax.ShapeDtypeStruct((bh2, W2p, c2), out_dtype),
        grid_spec=pltpu.PrefetchScalarGridSpec(
            num_scalar_prefetch=0,
            grid=(bh2 // tbh,),
            in_specs=[
                pl.BlockSpec((tbh, 2, W2p, c2), lambda i: (i, 0, 0, 0)),
                _inv_spec((1, c2)), _inv_spec((1, c2)),
                _inv_spec((1, c2)), _inv_spec((1, c2)),
                _inv_spec((c2, c2)), _inv_spec((c2, c2)),
            ],
            out_specs=pl.BlockSpec((tbh, W2p, c2), lambda i: (i, 0, 0)),
        ),
        compiler_params=pltpu.CompilerParams(
            dimension_semantics=("parallel",),
            vmem_limit_bytes=vmem_limit,
        ),
    )(xr, gt, gb, bt, bb, wt, wb)

    out = out.reshape(B, H2, W2p, c2)
    if W2p != W2:
        out = out[:, :, :W2, :]       # drop alignment-only padded 2x2 windows
    return out.reshape(B, H2 * W2, c2)


def _reference(x, H, W, gamma, beta, w_reduction):
    """Pure-JAX f32 reference mirroring the PyTorch forward."""
    B, L, C = x.shape
    x = x.reshape(B, H, W, C).astype(jnp.float32)
    if H % 2 or W % 2:
        x = jnp.pad(x, ((0, 0), (0, H % 2), (0, W % 2), (0, 0)))
    x0 = x[:, 0::2, 0::2, :]
    x1 = x[:, 1::2, 0::2, :]
    x2 = x[:, 0::2, 1::2, :]
    x3 = x[:, 1::2, 1::2, :]
    xm = jnp.concatenate([x0, x1, x2, x3], axis=-1).reshape(B, -1, 4 * C)
    mu = jnp.mean(xm, axis=-1, keepdims=True)
    var = jnp.mean((xm - mu) ** 2, axis=-1, keepdims=True)
    y = ((xm - mu) * lax.rsqrt(var + _LN_EPS) * gamma.astype(jnp.float32)
         + beta.astype(jnp.float32))
    return jnp.einsum("blk,ok->blo", y, w_reduction.astype(jnp.float32))


def _run_case(B, H, W, C, key, *, dtype=jnp.float32,
              single_buffer_params=True, tol=2.5e-2):
    kx, kw, kg, kb = jax.random.split(key, 4)
    x = jax.random.normal(kx, (B, H * W, C), dtype=jnp.float32).astype(dtype)
    w_reduction = 0.05 * jax.random.normal(kw, (2 * C, 4 * C), dtype=jnp.float32)
    gamma = 1.0 + 0.1 * jax.random.normal(kg, (4 * C,), dtype=jnp.float32)
    beta = 0.1 * jax.random.normal(kb, (4 * C,), dtype=jnp.float32)

    fn = jax.jit(patch_merging,
                 static_argnames=("H", "W", "single_buffer_params"))
    out = jax.block_until_ready(
        fn(x, H=H, W=W, gamma=gamma, beta=beta, w_reduction=w_reduction,
           single_buffer_params=single_buffer_params))
    ref = _reference(x, H, W, gamma, beta, w_reduction)

    Ho, Wo = (H + H % 2) // 2, (W + W % 2) // 2
    assert out.shape == (B, Ho * Wo, 2 * C), out.shape
    err = float(jnp.max(jnp.abs(out.astype(jnp.float32) - ref)))
    assert err <= tol, f"max abs err {err} > {tol}"


def _run_all(single_buffer_params):
    key = jax.random.PRNGKey(0)
    k1, k2, k3 = jax.random.split(key, 3)
    # W2 = 8: already tile-aligned, no extra W padding.
    _run_case(2, 16, 16, 16, k1, single_buffer_params=single_buffer_params)
    # Odd H/W (module zero-pad) and W2 = 4: handled by padding W up to W2p = 8
    # and cropping, instead of the old XLA-materialized merge fallback.
    _run_case(2, 7, 7, 16, k2, single_buffer_params=single_buffer_params)
    # bf16 activations (halves HBM traffic on this bandwidth-bound kernel),
    # even W but W2 = 6 -> padded to 8.
    _run_case(1, 12, 12, 16, k3, dtype=jnp.bfloat16,
              single_buffer_params=single_buffer_params, tol=5e-2)


if __name__ == "__main__":
    try:
        _run_all(single_buffer_params=True)
    except Exception:
        # pl.Buffered(1) single-buffering of the grid-invariant weight blocks
        # is the only optional feature used; if this JAX/Mosaic build rejects
        # it, rerun with default double buffering (identical numerics, only a
        # slightly larger VMEM footprint).
        _run_all(single_buffer_params=False)
    print("KERNEL_OK")
</pallas_src>

<mosaic_0001>
module attributes {stable_mosaic.version = 11 : i64} {
  func.func @_fused_kernel(%arg0: i32, %arg1: memref<8x2x8x32xf32, #tpu.memory_space<vmem>>, %arg2: memref<1x32xf32, #tpu.memory_space<vmem>>, %arg3: memref<1x32xf32, #tpu.memory_space<vmem>>, %arg4: memref<1x32xf32, #tpu.memory_space<vmem>>, %arg5: memref<1x32xf32, #tpu.memory_space<vmem>>, %arg6: memref<32x32xbf16, #tpu.memory_space<vmem>>, %arg7: memref<32x32xbf16, #tpu.memory_space<vmem>>, %arg8: memref<8x8x32xf32, #tpu.memory_space<vmem>>) attributes {dimension_semantics = [#tpu.dimension_semantics<parallel>], iteration_bounds = array<i64: 2>, scalar_prefetch = 0 : i64, scratch_operands = 0 : i64, tpu.core_type = #tpu.core_type<tc>, window_params = [{transform_indices = @transform_0, window_bounds = array<i64: 8, 2, 8, 32>}, {pipeline_mode = #tpu.pipeline_mode<synchronous>, transform_indices = @transform_1, window_bounds = array<i64: 1, 32>}, {pipeline_mode = #tpu.pipeline_mode<synchronous>, transform_indices = @transform_2, window_bounds = array<i64: 1, 32>}, {pipeline_mode = #tpu.pipeline_mode<synchronous>, transform_indices = @transform_3, window_bounds = array<i64: 1, 32>}, {pipeline_mode = #tpu.pipeline_mode<synchronous>, transform_indices = @transform_4, window_bounds = array<i64: 1, 32>}, {pipeline_mode = #tpu.pipeline_mode<synchronous>, transform_indices = @transform_5, window_bounds = array<i64: 32, 32>}, {pipeline_mode = #tpu.pipeline_mode<synchronous>, transform_indices = @transform_6, window_bounds = array<i64: 32, 32>}, {transform_indices = @transform_7, window_bounds = array<i64: 8, 8, 32>}]} {
    %c0 = arith.constant 0 : index
    %c0_0 = arith.constant 0 : index
    %c0_1 = arith.constant 0 : index
    %c0_2 = arith.constant 0 : index
    %0 = vector.load %arg1[%c0, %c0_0, %c0_1, %c0_2] : memref<8x2x8x32xf32, #tpu.memory_space<vmem>>, vector<8x1x8x32xf32>
    %1 = vector.shape_cast %0 : vector<8x1x8x32xf32> to vector<8x8x32xf32>
    %2 = vector.shape_cast %1 : vector<8x8x32xf32> to vector<64x32xf32>
    %c0_3 = arith.constant 0 : index
    %c1 = arith.constant 1 : index
    %c0_4 = arith.constant 0 : index
    %c0_5 = arith.constant 0 : index
    %3 = vector.load %arg1[%c0_3, %c1, %c0_4, %c0_5] : memref<8x2x8x32xf32, #tpu.memory_space<vmem>>, vector<8x1x8x32xf32>
    %4 = vector.shape_cast %3 : vector<8x1x8x32xf32> to vector<8x8x32xf32>
    %5 = vector.shape_cast %4 : vector<8x8x32xf32> to vector<64x32xf32>
    %cst = arith.constant dense<0.000000e+00> : vector<64xf32>
    %6 = vector.multi_reduction <add>, %2, %cst [1] : vector<64x32xf32> to vector<64xf32>
    %7 = vector.shape_cast %6 : vector<64xf32> to vector<64x1xf32>
    %cst_6 = arith.constant dense<0.000000e+00> : vector<64xf32>
    %8 = vector.multi_reduction <add>, %5, %cst_6 [1] : vector<64x32xf32> to vector<64xf32>
    %9 = vector.shape_cast %8 : vector<64xf32> to vector<64x1xf32>
    %10 = arith.addf %7, %9 : vector<64x1xf32>
    %cst_7 = arith.constant 1.562500e-02 : f32
    %11 = vector.broadcast %cst_7 : f32 to vector<64x1xf32>
    %12 = arith.mulf %10, %11 : vector<64x1xf32>
    %13 = vector.broadcast %12 : vector<64x1xf32> to vector<64x32xf32>
    %14 = arith.subf %2, %13 : vector<64x32xf32>
    %15 = vector.broadcast %12 : vector<64x1xf32> to vector<64x32xf32>
    %16 = arith.subf %5, %15 : vector<64x32xf32>
    %17 = arith.mulf %14, %14 : vector<64x32xf32>
    %cst_8 = arith.constant dense<0.000000e+00> : vector<64xf32>
    %18 = vector.multi_reduction <add>, %17, %cst_8 [1] : vector<64x32xf32> to vector<64xf32>
    %19 = vector.shape_cast %18 : vector<64xf32> to vector<64x1xf32>
    %20 = arith.mulf %16, %16 : vector<64x32xf32>
    %cst_9 = arith.constant dense<0.000000e+00> : vector<64xf32>
    %21 = vector.multi_reduction <add>, %20, %cst_9 [1] : vector<64x32xf32> to vector<64xf32>
    %22 = vector.shape_cast %21 : vector<64xf32> to vector<64x1xf32>
    %23 = arith.addf %19, %22 : vector<64x1xf32>
    %cst_10 = arith.constant 1.562500e-02 : f32
    %24 = vector.broadcast %cst_10 : f32 to vector<64x1xf32>
    %25 = arith.mulf %23, %24 : vector<64x1xf32>
    %cst_11 = arith.constant 9.99999974E-6 : f32
    %26 = vector.broadcast %cst_11 : f32 to vector<64x1xf32>
    %27 = arith.addf %25, %26 : vector<64x1xf32>
    %28 = math.rsqrt %27 : vector<64x1xf32>
    %29 = vector.broadcast %28 : vector<64x1xf32> to vector<64x32xf32>
    %30 = arith.mulf %14, %29 : vector<64x32xf32>
    %c0_12 = arith.constant 0 : index
    %c0_13 = arith.constant 0 : index
    %31 = vector.load %arg2[%c0_12, %c0_13] : memref<1x32xf32, #tpu.memory_space<vmem>>, vector<1x32xf32>
    %32 = vector.broadcast %31 : vector<1x32xf32> to vector<64x32xf32>
    %33 = arith.mulf %30, %32 : vector<64x32xf32>
    %c0_14 = arith.constant 0 : index
    %c0_15 = arith.constant 0 : index
    %34 = vector.load %arg4[%c0_14, %c0_15] : memref<1x32xf32, #tpu.memory_space<vmem>>, vector<1x32xf32>
    %35 = vector.broadcast %34 : vector<1x32xf32> to vector<64x32xf32>
    %36 = arith.addf %33, %35 : vector<64x32xf32>
    %37 = vector.broadcast %28 : vector<64x1xf32> to vector<64x32xf32>
    %38 = arith.mulf %16, %37 : vector<64x32xf32>
    %c0_16 = arith.constant 0 : index
    %c0_17 = arith.constant 0 : index
    %39 = vector.load %arg3[%c0_16, %c0_17] : memref<1x32xf32, #tpu.memory_space<vmem>>, vector<1x32xf32>
    %40 = vector.broadcast %39 : vector<1x32xf32> to vector<64x32xf32>
    %41 = arith.mulf %38, %40 : vector<64x32xf32>
    %c0_18 = arith.constant 0 : index
    %c0_19 = arith.constant 0 : index
    %42 = vector.load %arg5[%c0_18, %c0_19] : memref<1x32xf32, #tpu.memory_space<vmem>>, vector<1x32xf32>
    %43 = vector.broadcast %42 : vector<1x32xf32> to vector<64x32xf32>
    %44 = arith.addf %41, %43 : vector<64x32xf32>
    %45 = arith.truncf %36 : vector<64x32xf32> to vector<64x32xbf16>
    %c0_20 = arith.constant 0 : index
    %c0_21 = arith.constant 0 : index
    %46 = vector.load %arg6[%c0_20, %c0_21] : memref<32x32xbf16, #tpu.memory_space<vmem>>, vector<32x32xbf16>
    %cst_22 = arith.constant dense<0.000000e+00> : vector<64x32xf32>
    %47 = tpu.matmul %45, %46, %cst_22 {dimension_numbers = #tpu.dot_dimension_numbers<[1], [0], [0], [1], [0, 0, 1, 1], [], []>} : vector<64x32xbf16>, vector<32x32xbf16>, vector<64x32xf32> -> vector<64x32xf32>
    %48 = arith.truncf %44 : vector<64x32xf32> to vector<64x32xbf16>
    %c0_23 = arith.constant 0 : index
    %c0_24 = arith.constant 0 : index
    %49 = vector.load %arg7[%c0_23, %c0_24] : memref<32x32xbf16, #tpu.memory_space<vmem>>, vector<32x32xbf16>
    %cst_25 = arith.constant dense<0.000000e+00> : vector<64x32xf32>
    %50 = tpu.matmul %48, %49, %cst_25 {dimension_numbers = #tpu.dot_dimension_numbers<[1], [0], [0], [1], [0, 0, 1, 1], [], []>} : vector<64x32xbf16>, vector<32x32xbf16>, vector<64x32xf32> -> vector<64x32xf32>
    %51 = arith.addf %47, %50 : vector<64x32xf32>
    %52 = vector.shape_cast %51 : vector<64x32xf32> to vector<8x8x32xf32>
    %c0_26 = arith.constant 0 : index
    %c0_27 = arith.constant 0 : index
    %c0_28 = arith.constant 0 : index
    %53 = vector.load %arg8[%c0_26, %c0_27, %c0_28] : memref<8x8x32xf32, #tpu.memory_space<vmem>>, vector<8x8x32xf32>
    tpu.vector_store %arg8[%c0_26, %c0_27, %c0_28], %52 {strides = array<i32>} : memref<8x8x32xf32, #tpu.memory_space<vmem>>, vector<8x8x32xf32>,
    return
  }
  func.func @transform_0(%arg0: i32) -> (i32, i32, i32, i32) {
    %c0_i32 = arith.constant 0 : i32
    %c0_i32_0 = arith.constant 0 : i32
    %c0_i32_1 = arith.constant 0 : i32
    %c0_i32_2 = arith.constant 0 : i32
    return %arg0, %c0_i32, %c0_i32_0, %c0_i32_1 : i32, i32, i32, i32
  }
  func.func @transform_1(%arg0: i32) -> (i32, i32) {
    %c0_i32 = arith.constant 0 : i32
    %c0_i32_0 = arith.constant 0 : i32
    %c0_i32_1 = arith.constant 0 : i32
    return %c0_i32, %c0_i32_0 : i32, i32
  }
  func.func @transform_2(%arg0: i32) -> (i32, i32) {
    %c0_i32 = arith.constant 0 : i32
    %c0_i32_0 = arith.constant 0 : i32
    %c0_i32_1 = arith.constant 0 : i32
    return %c0_i32, %c0_i32_0 : i32, i32
  }
  func.func @transform_3(%arg0: i32) -> (i32, i32) {
    %c0_i32 = arith.constant 0 : i32
    %c0_i32_0 = arith.constant 0 : i32
    %c0_i32_1 = arith.constant 0 : i32
    return %c0_i32, %c0_i32_0 : i32, i32
  }
  func.func @transform_4(%arg0: i32) -> (i32, i32) {
    %c0_i32 = arith.constant 0 : i32
    %c0_i32_0 = arith.constant 0 : i32
    %c0_i32_1 = arith.constant 0 : i32
    return %c0_i32, %c0_i32_0 : i32, i32
  }
  func.func @transform_5(%arg0: i32) -> (i32, i32) {
    %c0_i32 = arith.constant 0 : i32
    %c0_i32_0 = arith.constant 0 : i32
    %c0_i32_1 = arith.constant 0 : i32
    return %c0_i32, %c0_i32_0 : i32, i32
  }
  func.func @transform_6(%arg0: i32) -> (i32, i32) {
    %c0_i32 = arith.constant 0 : i32
    %c0_i32_0 = arith.constant 0 : i32
    %c0_i32_1 = arith.constant 0 : i32
    return %c0_i32, %c0_i32_0 : i32, i32
  }
  func.func @transform_7(%arg0: i32) -> (i32, i32, i32) {
    %c0_i32 = arith.constant 0 : i32
    %c0_i32_0 = arith.constant 0 : i32
    %c0_i32_1 = arith.constant 0 : i32
    return %arg0, %c0_i32, %c0_i32_0 : i32, i32, i32
  }
}

module attributes {stable_mosaic.version = 11 : i64} {
  func.func @_fused_kernel(%arg0: i32, %arg1: memref<8x2x8x32xf32, #tpu.memory_space<vmem>>, %arg2: memref<1x32xf32, #tpu.memory_space<vmem>>, %arg3: memref<1x32xf32, #tpu.memory_space<vmem>>, %arg4: memref<1x32xf32, #tpu.memory_space<vmem>>, %arg5: memref<1x32xf32, #tpu.memory_space<vmem>>, %arg6: memref<32x32xbf16, #tpu.memory_space<vmem>>, %arg7: memref<32x32xbf16, #tpu.memory_space<vmem>>, %arg8: memref<8x8x32xf32, #tpu.memory_space<vmem>>) attributes {dimension_semantics = [#tpu.dimension_semantics<parallel>], iteration_bounds = array<i64: 2>, scalar_prefetch = 0 : i64, scratch_operands = 0 : i64, tpu.core_type = #tpu.core_type<tc>, window_params = [{transform_indices = @transform_0, window_bounds = array<i64: 8, 2, 8, 32>}, {pipeline_mode = #tpu.pipeline_mode<synchronous>, transform_indices = @transform_1, window_bounds = array<i64: 1, 32>}, {pipeline_mode = #tpu.pipeline_mode<synchronous>, transform_indices = @transform_2, window_bounds = array<i64: 1, 32>}, {pipeline_mode = #tpu.pipeline_mode<synchronous>, transform_indices = @transform_3, window_bounds = array<i64: 1, 32>}, {pipeline_mode = #tpu.pipeline_mode<synchronous>, transform_indices = @transform_4, window_bounds = array<i64: 1, 32>}, {pipeline_mode = #tpu.pipeline_mode<synchronous>, transform_indices = @transform_5, window_bounds = array<i64: 32, 32>}, {pipeline_mode = #tpu.pipeline_mode<synchronous>, transform_indices = @transform_6, window_bounds = array<i64: 32, 32>}, {transform_indices = @transform_7, window_bounds = array<i64: 8, 8, 32>}]} {
    %c0 = arith.constant 0 : index
    %c0_0 = arith.constant 0 : index
    %c0_1 = arith.constant 0 : index
    %c0_2 = arith.constant 0 : index
    %0 = vector.load %arg1[%c0, %c0_0, %c0_1, %c0_2] : memref<8x2x8x32xf32, #tpu.memory_space<vmem>>, vector<8x1x8x32xf32>
    %1 = vector.shape_cast %0 : vector<8x1x8x32xf32> to vector<8x8x32xf32>
    %2 = vector.shape_cast %1 : vector<8x8x32xf32> to vector<64x32xf32>
    %c0_3 = arith.constant 0 : index
    %c1 = arith.constant 1 : index
    %c0_4 = arith.constant 0 : index
    %c0_5 = arith.constant 0 : index
    %3 = vector.load %arg1[%c0_3, %c1, %c0_4, %c0_5] : memref<8x2x8x32xf32, #tpu.memory_space<vmem>>, vector<8x1x8x32xf32>
    %4 = vector.shape_cast %3 : vector<8x1x8x32xf32> to vector<8x8x32xf32>
    %5 = vector.shape_cast %4 : vector<8x8x32xf32> to vector<64x32xf32>
    %cst = arith.constant dense<0.000000e+00> : vector<64xf32>
    %6 = vector.multi_reduction <add>, %2, %cst [1] : vector<64x32xf32> to vector<64xf32>
    %7 = vector.shape_cast %6 : vector<64xf32> to vector<64x1xf32>
    %cst_6 = arith.constant dense<0.000000e+00> : vector<64xf32>
    %8 = vector.multi_reduction <add>, %5, %cst_6 [1] : vector<64x32xf32> to vector<64xf32>
    %9 = vector.shape_cast %8 : vector<64xf32> to vector<64x1xf32>
    %10 = arith.addf %7, %9 : vector<64x1xf32>
    %cst_7 = arith.constant 1.562500e-02 : f32
    %11 = vector.broadcast %cst_7 : f32 to vector<64x1xf32>
    %12 = arith.mulf %10, %11 : vector<64x1xf32>
    %13 = vector.broadcast %12 : vector<64x1xf32> to vector<64x32xf32>
    %14 = arith.subf %2, %13 : vector<64x32xf32>
    %15 = vector.broadcast %12 : vector<64x1xf32> to vector<64x32xf32>
    %16 = arith.subf %5, %15 : vector<64x32xf32>
    %17 = arith.mulf %14, %14 : vector<64x32xf32>
    %cst_8 = arith.constant dense<0.000000e+00> : vector<64xf32>
    %18 = vector.multi_reduction <add>, %17, %cst_8 [1] : vector<64x32xf32> to vector<64xf32>
    %19 = vector.shape_cast %18 : vector<64xf32> to vector<64x1xf32>
    %20 = arith.mulf %16, %16 : vector<64x32xf32>
    %cst_9 = arith.constant dense<0.000000e+00> : vector<64xf32>
    %21 = vector.multi_reduction <add>, %20, %cst_9 [1] : vector<64x32xf32> to vector<64xf32>
    %22 = vector.shape_cast %21 : vector<64xf32> to vector<64x1xf32>
    %23 = arith.addf %19, %22 : vector<64x1xf32>
    %cst_10 = arith.constant 1.562500e-02 : f32
    %24 = vector.broadcast %cst_10 : f32 to vector<64x1xf32>
    %25 = arith.mulf %23, %24 : vector<64x1xf32>
    %cst_11 = arith.constant 9.99999974E-6 : f32
    %26 = vector.broadcast %cst_11 : f32 to vector<64x1xf32>
    %27 = arith.addf %25, %26 : vector<64x1xf32>
    %28 = math.rsqrt %27 : vector<64x1xf32>
    %29 = vector.broadcast %28 : vector<64x1xf32> to vector<64x32xf32>
    %30 = arith.mulf %14, %29 : vector<64x32xf32>
    %c0_12 = arith.constant 0 : index
    %c0_13 = arith.constant 0 : index
    %31 = vector.load %arg2[%c0_12, %c0_13] : memref<1x32xf32, #tpu.memory_space<vmem>>, vector<1x32xf32>
    %32 = vector.broadcast %31 : vector<1x32xf32> to vector<64x32xf32>
    %33 = arith.mulf %30, %32 : vector<64x32xf32>
    %c0_14 = arith.constant 0 : index
    %c0_15 = arith.constant 0 : index
    %34 = vector.load %arg4[%c0_14, %c0_15] : memref<1x32xf32, #tpu.memory_space<vmem>>, vector<1x32xf32>
    %35 = vector.broadcast %34 : vector<1x32xf32> to vector<64x32xf32>
    %36 = arith.addf %33, %35 : vector<64x32xf32>
    %37 = vector.broadcast %28 : vector<64x1xf32> to vector<64x32xf32>
    %38 = arith.mulf %16, %37 : vector<64x32xf32>
    %c0_16 = arith.constant 0 : index
    %c0_17 = arith.constant 0 : index
    %39 = vector.load %arg3[%c0_16, %c0_17] : memref<1x32xf32, #tpu.memory_space<vmem>>, vector<1x32xf32>
    %40 = vector.broadcast %39 : vector<1x32xf32> to vector<64x32xf32>
    %41 = arith.mulf %38, %40 : vector<64x32xf32>
    %c0_18 = arith.constant 0 : index
    %c0_19 = arith.constant 0 : index
    %42 = vector.load %arg5[%c0_18, %c0_19] : memref<1x32xf32, #tpu.memory_space<vmem>>, vector<1x32xf32>
    %43 = vector.broadcast %42 : vector<1x32xf32> to vector<64x32xf32>
    %44 = arith.addf %41, %43 : vector<64x32xf32>
    %45 = arith.truncf %36 : vector<64x32xf32> to vector<64x32xbf16>
    %c0_20 = arith.constant 0 : index
    %c0_21 = arith.constant 0 : index
    %46 = vector.load %arg6[%c0_20, %c0_21] : memref<32x32xbf16, #tpu.memory_space<vmem>>, vector<32x32xbf16>
    %cst_22 = arith.constant dense<0.000000e+00> : vector<64x32xf32>
    %47 = tpu.matmul %45, %46, %cst_22 {dimension_numbers = #tpu.dot_dimension_numbers<[1], [0], [0], [1], [0, 0, 1, 1], [], []>} : vector<64x32xbf16>, vector<32x32xbf16>, vector<64x32xf32> -> vector<64x32xf32>
    %48 = arith.truncf %44 : vector<64x32xf32> to vector<64x32xbf16>
    %c0_23 = arith.constant 0 : index
    %c0_24 = arith.constant 0 : index
    %49 = vector.load %arg7[%c0_23, %c0_24] : memref<32x32xbf16, #tpu.memory_space<vmem>>, vector<32x32xbf16>
    %cst_25 = arith.constant dense<0.000000e+00> : vector<64x32xf32>
    %50 = tpu.matmul %48, %49, %cst_25 {dimension_numbers = #tpu.dot_dimension_numbers<[1], [0], [0], [1], [0, 0, 1, 1], [], []>} : vector<64x32xbf16>, vector<32x32xbf16>, vector<64x32xf32> -> vector<64x32xf32>
    %51 = arith.addf %47, %50 : vector<64x32xf32>
    %52 = vector.shape_cast %51 : vector<64x32xf32> to vector<8x8x32xf32>
    %c0_26 = arith.constant 0 : index
    %c0_27 = arith.constant 0 : index
    %c0_28 = arith.constant 0 : index
    %53 = vector.load %arg8[%c0_26, %c0_27, %c0_28] : memref<8x8x32xf32, #tpu.memory_space<vmem>>, vector<8x8x32xf32>
    tpu.vector_store %arg8[%c0_26, %c0_27, %c0_28], %52 {strides = array<i32>} : memref<8x8x32xf32, #tpu.memory_space<vmem>>, vector<8x8x32xf32>,
    return
  }
  func.func @transform_0(%arg0: i32) -> (i32, i32, i32, i32) {
    %c0_i32 = arith.constant 0 : i32
    %c0_i32_0 = arith.constant 0 : i32
    %c0_i32_1 = arith.constant 0 : i32
    %c0_i32_2 = arith.constant 0 : i32
    return %arg0, %c0_i32, %c0_i32_0, %c0_i32_1 : i32, i32, i32, i32
  }
  func.func @transform_1(%arg0: i32) -> (i32, i32) {
    %c0_i32 = arith.constant 0 : i32
    %c0_i32_0 = arith.constant 0 : i32
    %c0_i32_1 = arith.constant 0 : i32
    return %c0_i32, %c0_i32_0 : i32, i32
  }
  func.func @transform_2(%arg0: i32) -> (i32, i32) {
    %c0_i32 = arith.constant 0 : i32
    %c0_i32_0 = arith.constant 0 : i32
    %c0_i32_1 = arith.constant 0 : i32
    return %c0_i32, %c0_i32_0 : i32, i32
  }
  func.func @transform_3(%arg0: i32) -> (i32, i32) {
    %c0_i32 = arith.constant 0 : i32
    %c0_i32_0 = arith.constant 0 : i32
    %c0_i32_1 = arith.constant 0 : i32
    return %c0_i32, %c0_i32_0 : i32, i32
  }
  func.func @transform_4(%arg0: i32) -> (i32, i32) {
    %c0_i32 = arith.constant 0 : i32
    %c0_i32_0 = arith.constant 0 : i32
    %c0_i32_1 = arith.constant 0 : i32
    return %c0_i32, %c0_i32_0 : i32, i32
  }
  func.func @transform_5(%arg0: i32) -> (i32, i32) {
    %c0_i32 = arith.constant 0 : i32
    %c0_i32_0 = arith.constant 0 : i32
    %c0_i32_1 = arith.constant 0 : i32
    return %c0_i32, %c0_i32_0 : i32, i32
  }
  func.func @transform_6(%arg0: i32) -> (i32, i32) {
    %c0_i32 = arith.constant 0 : i32
    %c0_i32_0 = arith.constant 0 : i32
    %c0_i32_1 = arith.constant 0 : i32
    return %c0_i32, %c0_i32_0 : i32, i32
  }
  func.func @transform_7(%arg0: i32) -> (i32, i32, i32) {
    %c0_i32 = arith.constant 0 : i32
    %c0_i32_0 = arith.constant 0 : i32
    %c0_i32_1 = arith.constant 0 : i32
    return %arg0, %c0_i32, %c0_i32_0 : i32, i32, i32
  }
}

</mosaic_0001>

<llo_original>
// kernel: patch_merging.1
$region0: #{patch_merging.1}
  #allocation0 [shape = 'u32[]', space=smem, size = 0x4, offset = 0x4, fixed_abs, tag = 'smem constant byte address 0x4 - core index']
  #allocation1 [shape = 'u32[72,128]{1,0:T(1,128)}', space=vmem, size = 0x9000, scoped, tag = 'internal scratch']
  %s0 = inlined_call_operand.vmem [shape: f32[16,2,8,32], index: 0, kind: input, shape index: {}]
  %s1 = inlined_call_operand.vmem [shape: f32[1,32], index: 1, kind: input, shape index: {}]
  %s2 = inlined_call_operand.vmem [shape: f32[1,32], index: 2, kind: input, shape index: {}]
  %s3 = inlined_call_operand.vmem [shape: f32[1,32], index: 3, kind: input, shape index: {}]
  %s4 = inlined_call_operand.vmem [shape: f32[1,32], index: 4, kind: input, shape index: {}]
  %s5 = inlined_call_operand.vmem [shape: bf16[32,32], index: 5, kind: input, shape index: {}]
  %s6 = inlined_call_operand.vmem [shape: bf16[32,32], index: 6, kind: input, shape index: {}]
  %s7 = inlined_call_operand.vmem [shape: f32[16,8,32], index: 7, kind: output, shape index: {}]
  %s8 = sld [smem:[#allocation0]]
  $region61: #{patch_merging.1} parent=0
    _
  %s10 = ssub.s32 1, %s8
  %s11 = scalar_select 0, %s10, %s8
  loop: start=0, step=1, limit=4
  $region2: #{patch_merging.1} parent=0 // loop_pre_header
    _
  $region3: #{patch_merging.1} parent=0 // loop_header
    %s13 = sphi 0, %s17
    %p14 = scmp.ge.s32.totalorder %s13, 4
    %s23 = sphi 0, %s25
    %s26 = sphi 0, %s23
    %s27 = sphi 0, %s26
    %s43 = sphi 0, %s27
    %s47 = sphi 0, %s47
    %s49 = sphi 0, %s47
    %s50 = sphi 0, %s49
    %s64 = sphi 0, %s50
    %s68 = sphi 0, %s68
    %s70 = sphi 0, %s68
    %s71 = sphi 0, %s70
    %s85 = sphi 0, %s71
    %s89 = sphi 0, %s89
    %s91 = sphi 0, %s89
    %s92 = sphi 0, %s91
    %s106 = sphi 0, %s92
    %s110 = sphi 0, %s110
    %s112 = sphi 0, %s110
    %s113 = sphi 0, %s112
    %s127 = sphi 0, %s113
    %s131 = sphi 0, %s131
    %s133 = sphi 0, %s131
    %s134 = sphi 0, %s133
    %s148 = sphi 0, %s134
    %s152 = sphi 0, %s152
    %s154 = sphi 0, %s152
    %s155 = sphi 0, %s154
    %s169 = sphi 0, %s155
    %s175 = sphi 0, %s177
    %s178 = sphi 0, %s175
    %s179 = sphi 0, %s178
    %s195 = sphi 0, %s179
  $region4: #{patch_merging.1} parent=0 // loop_header_branch
    %16 = sbr.rel (%p14) target = $region8
  $region5: #{patch_merging.1} parent=0 // loop_body
    %s18 = ssub.s32 %s13, 1
    %s19 = ssub.s32 %s13, 2
    %s20 = sadd.s32 %s13, 1
    %s21 = ssub.s32 %s13, %s20
    %p22 = scmp.eq.s32.totalorder %s21, 0
    %s24 = sadd.s32 %s23, 1
    %s25 = scalar_select %p22, %s23, %s24
    %p28 = pneg %p22
    %p29 = scmp.eq.s32.totalorder %s13, 1
    %p30 = por %p28, %p29
    %p31 = scmp.ne.s32.totalorder %s23, %s26
    %p32 = scmp.eq.s32.totalorder %s13, 0
    %p33 = por %p31, %p32
    %p34 = scmp.ne.s32.totalorder %s23, %s26
    %p35 = scmp.eq.s32.totalorder %s18, 1
    %p36 = por %p34, %p35
    %p37 = scmp.ne.s32.totalorder %s26, %s27
    %p38 = scmp.eq.s32.totalorder %s18, 0
    %p39 = por %p37, %p38
    %p40 = scmp.ne.s32.totalorder %s26, %s27
    %p41 = scmp.eq.s32.totalorder %s19, 1
    %p42 = por %p40, %p41
    %p44 = scmp.ne.s32.totalorder %s27, %s43
    %p45 = scmp.eq.s32.totalorder %s19, 0
    %p46 = por %p44, %p45
    %s48 = sadd.s32 %s47, 1
    %p51 = scmp.eq.s32.totalorder %s13, 1
    %p52 = scmp.ne.s32.totalorder %s47, %s49
    %p53 = scmp.eq.s32.totalorder %s13, 0
    %p54 = por %p52, %p53
    %p55 = scmp.ne.s32.totalorder %s47, %s49
    %p56 = scmp.eq.s32.totalorder %s18, 1
    %p57 = por %p55, %p56
    %p58 = scmp.ne.s32.totalorder %s49, %s50
    %p59 = scmp.eq.s32.totalorder %s18, 0
    %p60 = por %p58, %p59
    %p61 = scmp.ne.s32.totalorder %s49, %s50
    %p62 = scmp.eq.s32.totalorder %s19, 1
    %p63 = por %p61, %p62
    %p65 = scmp.ne.s32.totalorder %s50, %s64
    %p66 = scmp.eq.s32.totalorder %s19, 0
    %p67 = por %p65, %p66
    %s69 = sadd.s32 %s68, 1
    %p72 = scmp.eq.s32.totalorder %s13, 1
    %p73 = scmp.ne.s32.totalorder %s68, %s70
    %p74 = scmp.eq.s32.totalorder %s13, 0
    %p75 = por %p73, %p74
    %p76 = scmp.ne.s32.totalorder %s68, %s70
    %p77 = scmp.eq.s32.totalorder %s18, 1
    %p78 = por %p76, %p77
    %p79 = scmp.ne.s32.totalorder %s70, %s71
    %p80 = scmp.eq.s32.totalorder %s18, 0
    %p81 = por %p79, %p80
    %p82 = scmp.ne.s32.totalorder %s70, %s71
    %p83 = scmp.eq.s32.totalorder %s19, 1
    %p84 = por %p82, %p83
    %p86 = scmp.ne.s32.totalorder %s71, %s85
    %p87 = scmp.eq.s32.totalorder %s19, 0
    %p88 = por %p86, %p87
    %s90 = sadd.s32 %s89, 1
    %p93 = scmp.eq.s32.totalorder %s13, 1
    %p94 = scmp.ne.s32.totalorder %s89, %s91
    %p95 = scmp.eq.s32.totalorder %s13, 0
    %p96 = por %p94, %p95
    %p97 = scmp.ne.s32.totalorder %s89, %s91
    %p98 = scmp.eq.s32.totalorder %s18, 1
    %p99 = por %p97, %p98
    %p100 = scmp.ne.s32.totalorder %s91, %s92
    %p101 = scmp.eq.s32.totalorder %s18, 0
    %p102 = por %p100, %p101
    %p103 = scmp.ne.s32.totalorder %s91, %s92
    %p104 = scmp.eq.s32.totalorder %s19, 1
    %p105 = por %p103, %p104
    %p107 = scmp.ne.s32.totalorder %s92, %s106
    %p108 = scmp.eq.s32.totalorder %s19, 0
    %p109 = por %p107, %p108
    %s111 = sadd.s32 %s110, 1
    %p114 = scmp.eq.s32.totalorder %s13, 1
    %p115 = scmp.ne.s32.totalorder %s110, %s112
    %p116 = scmp.eq.s32.totalorder %s13, 0
    %p117 = por %p115, %p116
    %p118 = scmp.ne.s32.totalorder %s110, %s112
    %p119 = scmp.eq.s32.totalorder %s18, 1
    %p120 = por %p118, %p119
    %p121 = scmp.ne.s32.totalorder %s112, %s113
    %p122 = scmp.eq.s32.totalorder %s18, 0
    %p123 = por %p121, %p122
    %p124 = scmp.ne.s32.totalorder %s112, %s113
    %p125 = scmp.eq.s32.totalorder %s19, 1
    %p126 = por %p124, %p125
    %p128 = scmp.ne.s32.totalorder %s113, %s127
    %p129 = scmp.eq.s32.totalorder %s19, 0
    %p130 = por %p128, %p129
    %s132 = sadd.s32 %s131, 1
    %p135 = scmp.eq.s32.totalorder %s13, 1
    %p136 = scmp.ne.s32.totalorder %s131, %s133
    %p137 = scmp.eq.s32.totalorder %s13, 0
    %p138 = por %p136, %p137
    %p139 = scmp.ne.s32.totalorder %s131, %s133
    %p140 = scmp.eq.s32.totalorder %s18, 1
    %p141 = por %p139, %p140
    %p142 = scmp.ne.s32.totalorder %s133, %s134
    %p143 = scmp.eq.s32.totalorder %s18, 0
    %p144 = por %p142, %p143
    %p145 = scmp.ne.s32.totalorder %s133, %s134
    %p146 = scmp.eq.s32.totalorder %s19, 1
    %p147 = por %p145, %p146
    %p149 = scmp.ne.s32.totalorder %s134, %s148
    %p150 = scmp.eq.s32.totalorder %s19, 0
    %p151 = por %p149, %p150
    %s153 = sadd.s32 %s152, 1
    %p156 = scmp.eq.s32.totalorder %s13, 1
    %p157 = scmp.ne.s32.totalorder %s152, %s154
    %p158 = scmp.eq.s32.totalorder %s13, 0
    %p159 = por %p157, %p158
    %p160 = scmp.ne.s32.totalorder %s152, %s154
    %p161 = scmp.eq.s32.totalorder %s18, 1
    %p162 = por %p160, %p161
    %p163 = scmp.ne.s32.totalorder %s154, %s155
    %p164 = scmp.eq.s32.totalorder %s18, 0
    %p165 = por %p163, %p164
    %p166 = scmp.ne.s32.totalorder %s154, %s155
    %p167 = scmp.eq.s32.totalorder %s19, 1
    %p168 = por %p166, %p167
    %p170 = scmp.ne.s32.totalorder %s155, %s169
    %p171 = scmp.eq.s32.totalorder %s19, 0
    %p172 = por %p170, %p171
    %s173 = ssub.s32 %s13, %s20
    %p174 = scmp.eq.s32.totalorder %s173, 0
    %s176 = sadd.s32 %s175, 1
    %s177 = scalar_select %p174, %s175, %s176
    %p180 = pneg %p174
    %p181 = scmp.eq.s32.totalorder %s13, 1
    %p182 = por %p180, %p181
    %p183 = scmp.ne.s32.totalorder %s175, %s178
    %p184 = scmp.eq.s32.totalorder %s13, 0
    %p185 = por %p183, %p184
    %p186 = scmp.ne.s32.totalorder %s175, %s178
    %p187 = scmp.eq.s32.totalorder %s18, 1
    %p188 = por %p186, %p187
    %p189 = scmp.ne.s32.totalorder %s178, %s179
    %p190 = scmp.eq.s32.totalorder %s18, 0
    %p191 = por %p189, %p190
    %p192 = scmp.ne.s32.totalorder %s178, %s179
    %p193 = scmp.eq.s32.totalorder %s19, 1
    %p194 = por %p192, %p193
    %p196 = scmp.ne.s32.totalorder %s179, %s195
    %p197 = scmp.eq.s32.totalorder %s19, 0
    %p198 = por %p196, %p197
    %p199 = scmp.le.s32.totalorder 1, %s13
    %p200 = scmp.lt.s32.totalorder %s13, 3
    %p201 = pnand %p199, %p200
    %p202 = pneg %p201
    // Predicated region
    $region9: #{patch_merging.1} parent=5 // pred_check
      _
    $region10: #{patch_merging.1} parent=5 // pred_check_branch
      %204 = sbr.rel (%p201) target = $region12
    $region11: #{patch_merging.1} parent=5 // pred_region
      %s205 = ssub.s32 %s13, 1
      // Predicated region
      $region13: #{patch_merging.1} parent=11 // pred_check
        %p206 = pneg %p60
      $region14: #{patch_merging.1} parent=11 // pred_check_branch
        %208 = sbr.rel (%p206) target = $region16
      $region15: #{patch_merging.1} parent=11 // pred_region
        _
      $region16: #{patch_merging.1} parent=11 // pred_fallthru
        _
      // Predicated region
      $region17: #{patch_merging.1} parent=11 // pred_check
        %p209 = pneg %p81
      $region18: #{patch_merging.1} parent=11 // pred_check_branch
        %211 = sbr.rel (%p209) target = $region20
      $region19: #{patch_merging.1} parent=11 // pred_region
        _
      $region20: #{patch_merging.1} parent=11 // pred_fallthru
        _
      // Predicated region
      $region21: #{patch_merging.1} parent=11 // pred_check
        %p212 = pneg %p102
      $region22: #{patch_merging.1} parent=11 // pred_check_branch
        %214 = sbr.rel (%p212) target = $region24
      $region23: #{patch_merging.1} parent=11 // pred_region
        _
      $region24: #{patch_merging.1} parent=11 // pred_fallthru
        _
      // Predicated region
      $region25: #{patch_merging.1} parent=11 // pred_check
        %p215 = pneg %p123
      $region26: #{patch_merging.1} parent=11 // pred_check_branch
        %217 = sbr.rel (%p215) target = $region28
      $region27: #{patch_merging.1} parent=11 // pred_region
        _
      $region28: #{patch_merging.1} parent=11 // pred_fallthru
        _
      // Predicated region
      $region29: #{patch_merging.1} parent=11 // pred_check
        %p218 = pneg %p144
      $region30: #{patch_merging.1} parent=11 // pred_check_branch
        %220 = sbr.rel (%p218) target = $region32
      $region31: #{patch_merging.1} parent=11 // pred_region
        _
      $region32: #{patch_merging.1} parent=11 // pred_fallthru
        _
      // Predicated region
      $region33: #{patch_merging.1} parent=11 // pred_check
        %p221 = pneg %p165
      $region34: #{patch_merging.1} parent=11 // pred_check_branch
        %223 = sbr.rel (%p221) target = $region36
      $region35: #{patch_merging.1} parent=11 // pred_region
        _
      $region36: #{patch_merging.1} parent=11 // pred_fallthru
        _
    $region12: #{patch_merging.1} parent=5 // pred_fallthru
      _
    %p224 = scmp.lt.s32.totalorder %s13, 2
    // Predicated region
    $region37: #{patch_merging.1} parent=5 // pred_check
      %p225 = pneg %p224
    $region38: #{patch_merging.1} parent=5 // pred_check_branch
      %227 = sbr.rel (%p225) target = $region40
    $region39: #{patch_merging.1} parent=5 // pred_region
      // Predicated region
      $region41: #{patch_merging.1} parent=39 // pred_check
        %p228 = pneg %p33
      $region42: #{patch_merging.1} parent=39 // pred_check_branch
        %230 = sbr.rel (%p228) target = $region44
      $region43: #{patch_merging.1} parent=39 // pred_region
        %s231 = smul.u32 8, %s13
        %p232 = scmp.lt.s32.totalorder %s231, 15
        %s233 = scalar_select %p232, %s231, 15
        %s234 = smul.addr %s233, 2
        %s235 = smul.addr %s234, 8
        %s236 = scalar_lea.vmem %s0, %s235
        %s237 = smul.u32 8, %s13
      $region44: #{patch_merging.1} parent=39 // pred_fallthru
        _
    $region40: #{patch_merging.1} parent=5 // pred_fallthru
      _
    %p238 = scmp.le.s32.totalorder 1, %s13
    %p239 = scmp.lt.s32.totalorder %s13, 3
    %p240 = pnand %p238, %p239
    %p241 = pneg %p240
    // Predicated region
    $region45: #{patch_merging.1} parent=5 // pred_check
      _
    $region46: #{patch_merging.1} parent=5 // pred_check_branch
      %243 = sbr.rel (%p240) target = $region48
    $region47: #{patch_merging.1} parent=5 // pred_region
      %s244 = ssub.s32 %s13, 1
      %s245 = smul.u32 8, %s18
      %p246 = scmp.lt.s32.totalorder %s245, 15
      %s247 = scalar_select %p246, %s245, 15
      %s248 = smul.addr %s247, 2
      %s249 = smul.addr %s248, 8
      %s250 = scalar_lea.vmem %s0, %s249
      %p251 = pneg %p39
      %p252 = pneg %p36
      %p253 = pneg %p60
      %p254 = pneg %p57
      %p255 = pneg %p81
      %p256 = pneg %p78
      %p257 = pneg %p102
      %p258 = pneg %p99
      %p259 = pneg %p123
      %p260 = pneg %p120
      %p261 = pneg %p144
      %p262 = pneg %p141
      %p263 = pneg %p165
      %p264 = pneg %p162
      %p265 = pneg %p191
      %p266 = pneg %p188
      %s267 = smul.u32 8, %s18
      %p268 = scmp.lt.s32.totalorder %s267, 15
      %s269 = scalar_select %p268, %s267, 15
      %s270 = smul.addr %s269, 8
      %s271 = scalar_lea.vmem %s7, %s270
      %s272 = smul.u32 8, %s18
      %p273 = scmp.lt.s32.totalorder %s272, 15
      %s274 = scalar_select %p273, %s272, 15
      %s275 = smul.addr %s274, 2
      %s276 = smul.addr %s275, 8
      %s277 = scalar_lea.vmem %s0, %s276
      %s278 = smul.u32 8, %s18
      %s279 = smul.u32 8, %s18
      %p280 = scmp.lt.s32.totalorder %s279, 15
      %s281 = scalar_select %p280, %s279, 15
      %s282 = smul.addr %s281, 8
      %s283 = scalar_lea.vmem %s7, %s282
      %s284 = smul.u32 8, %s18
      %v286 = vld [vmem:[%s277] sm:$0xff]
      %v287 = vld [vmem:[%s277 + $0x10] sm:$0xff]
      %v288 = vld [vmem:[%s277 + $0x20] sm:$0xff]
      %v289 = vld [vmem:[%s277 + $0x30] sm:$0xff]
      %v290 = vld [vmem:[%s277 + $0x40] sm:$0xff]
      %v291 = vld [vmem:[%s277 + $0x50] sm:$0xff]
      %v292 = vld [vmem:[%s277 + $0x60] sm:$0xff]
      %v293 = vld [vmem:[%s277 + $0x70] sm:$0xff]
      %s294 = scalar_lea.vmem %s277, 8
      %v295 = vld [vmem:[%s294] sm:$0xff]
      %v296 = vld [vmem:[%s294 + $0x10] sm:$0xff]
      %v297 = vld [vmem:[%s294 + $0x20] sm:$0xff]
      %v298 = vld [vmem:[%s294 + $0x30] sm:$0xff]
      %v299 = vld [vmem:[%s294 + $0x40] sm:$0xff]
      %v300 = vld [vmem:[%s294 + $0x50] sm:$0xff]
      %v301 = vld [vmem:[%s294 + $0x60] sm:$0xff]
      %v302 = vld [vmem:[%s294 + $0x70] sm:$0xff]
      %vm303 = vcmask 261120
      %v304 = vsel %vm303, %v286, 0.0
      %305 = vadd.xlane.f32.xlu0 %v304
      %v306 = vpop.xlane.xlu0 %305
      %v307 = vsel %vm303, %v287, 0.0
      %308 = vadd.xlane.f32.xlu0 %v307
      %v309 = vpop.xlane.xlu0 %308
      %v310 = vsel %vm303, %v288, 0.0
      %311 = vadd.xlane.f32.xlu0 %v310
      %v312 = vpop.xlane.xlu0 %311
      %v313 = vsel %vm303, %v289, 0.0
      %314 = vadd.xlane.f32.xlu0 %v313
      %v315 = vpop.xlane.xlu0 %314
      %v316 = vsel %vm303, %v290, 0.0
      %317 = vadd.xlane.f32.xlu0 %v316
      %v318 = vpop.xlane.xlu0 %317
      %v319 = vsel %vm303, %v291, 0.0
      %320 = vadd.xlane.f32.xlu0 %v319
      %v321 = vpop.xlane.xlu0 %320
      %v322 = vsel %vm303, %v292, 0.0
      %323 = vadd.xlane.f32.xlu0 %v322
      %v324 = vpop.xlane.xlu0 %323
      %v325 = vsel %vm303, %v293, 0.0
      %326 = vadd.xlane.f32.xlu0 %v325
      %v327 = vpop.xlane.xlu0 %326
      %v328 = vsel %vm303, %v295, 0.0
      %329 = vadd.xlane.f32.xlu0 %v328
      %v330 = vpop.xlane.xlu0 %329
      %v331 = vsel %vm303, %v296, 0.0
      %332 = vadd.xlane.f32.xlu0 %v331
      %v333 = vpop.xlane.xlu0 %332
      %v334 = vsel %vm303, %v297, 0.0
      %335 = vadd.xlane.f32.xlu0 %v334
      %v336 = vpop.xlane.xlu0 %335
      %v337 = vsel %vm303, %v298, 0.0
      %338 = vadd.xlane.f32.xlu0 %v337
      %v339 = vpop.xlane.xlu0 %338
      %v340 = vsel %vm303, %v299, 0.0
      %341 = vadd.xlane.f32.xlu0 %v340
      %v342 = vpop.xlane.xlu0 %341
      %v343 = vsel %vm303, %v300, 0.0
      %344 = vadd.xlane.f32.xlu0 %v343
      %v345 = vpop.xlane.xlu0 %344
      %v346 = vsel %vm303, %v301, 0.0
      %347 = vadd.xlane.f32.xlu0 %v346
      %v348 = vpop.xlane.xlu0 %347
      %v349 = vsel %vm303, %v302, 0.0
      %350 = vadd.xlane.f32.xlu0 %v349
      %v351 = vpop.xlane.xlu0 %350
      %v352 = vadd.f32 %v306, %v330
      %v353 = vadd.f32 %v309, %v333
      %v354 = vadd.f32 %v312, %v336
      %v355 = vadd.f32 %v315, %v339
      %v356 = vadd.f32 %v318, %v342
      %v357 = vadd.f32 %v321, %v345
      %v358 = vadd.f32 %v324, %v348
      %v359 = vadd.f32 %v327, %v351
      %v360 = vmul.f32 %v352, 0.015625
      %v361 = vmul.f32 %v353, 0.015625
      %v362 = vmul.f32 %v354, 0.015625
      %v363 = vmul.f32 %v355, 0.015625
      %v364 = vmul.f32 %v356, 0.015625
      %v365 = vmul.f32 %v357, 0.015625
      %v366 = vmul.f32 %v358, 0.015625
      %v367 = vmul.f32 %v359, 0.015625
      %v368 = vsub.f32 %v286, %v360
      %v369 = vsub.f32 %v287, %v361
      %v370 = vsub.f32 %v288, %v362
      %v371 = vsub.f32 %v289, %v363
      %v372 = vsub.f32 %v290, %v364
      %v373 = vsub.f32 %v291, %v365
      %v374 = vsub.f32 %v292, %v366
      %v375 = vsub.f32 %v293, %v367
      %v376 = vsub.f32 %v295, %v360
      %v377 = vsub.f32 %v296, %v361
      %v378 = vsub.f32 %v297, %v362
      %v379 = vsub.f32 %v298, %v363
      %v380 = vsub.f32 %v299, %v364
      %v381 = vsub.f32 %v300, %v365
      %v382 = vsub.f32 %v301, %v366
      %v383 = vsub.f32 %v302, %v367
      %v384 = vmul.f32 %v368, %v368
      %v385 = vmul.f32 %v369, %v369
      %v386 = vmul.f32 %v370, %v370
      %v387 = vmul.f32 %v371, %v371
      %v388 = vmul.f32 %v372, %v372
      %v389 = vmul.f32 %v373, %v373
      %v390 = vmul.f32 %v374, %v374
      %v391 = vmul.f32 %v375, %v375
      %v392 = vsel %vm303, %v384, 0.0
      %393 = vadd.xlane.f32.xlu0 %v392
      %v394 = vpop.xlane.xlu0 %393
      %v395 = vsel %vm303, %v385, 0.0
      %396 = vadd.xlane.f32.xlu0 %v395
      %v397 = vpop.xlane.xlu0 %396
      %v398 = vsel %vm303, %v386, 0.0
      %399 = vadd.xlane.f32.xlu0 %v398
      %v400 = vpop.xlane.xlu0 %399
      %v401 = vsel %vm303, %v387, 0.0
      %402 = vadd.xlane.f32.xlu0 %v401
      %v403 = vpop.xlane.xlu0 %402
      %v404 = vsel %vm303, %v388, 0.0
      %405 = vadd.xlane.f32.xlu0 %v404
      %v406 = vpop.xlane.xlu0 %405
      %v407 = vsel %vm303, %v389, 0.0
      %408 = vadd.xlane.f32.xlu0 %v407
      %v409 = vpop.xlane.xlu0 %408
      %v410 = vsel %vm303, %v390, 0.0
      %411 = vadd.xlane.f32.xlu0 %v410
      %v412 = vpop.xlane.xlu0 %411
      %v413 = vsel %vm303, %v391, 0.0
      %414 = vadd.xlane.f32.xlu0 %v413
      %v415 = vpop.xlane.xlu0 %414
      %v416 = vmul.f32 %v376, %v376
      %v417 = vmul.f32 %v377, %v377
      %v418 = vmul.f32 %v378, %v378
      %v419 = vmul.f32 %v379, %v379
      %v420 = vmul.f32 %v380, %v380
      %v421 = vmul.f32 %v381, %v381
      %v422 = vmul.f32 %v382, %v382
      %v423 = vmul.f32 %v383, %v383
      %v424 = vsel %vm303, %v416, 0.0
      %425 = vadd.xlane.f32.xlu0 %v424
      %v426 = vpop.xlane.xlu0 %425
      %v427 = vsel %vm303, %v417, 0.0
      %428 = vadd.xlane.f32.xlu0 %v427
      %v429 = vpop.xlane.xlu0 %428
      %v430 = vsel %vm303, %v418, 0.0
      %431 = vadd.xlane.f32.xlu0 %v430
      %v432 = vpop.xlane.xlu0 %431
      %v433 = vsel %vm303, %v419, 0.0
      %434 = vadd.xlane.f32.xlu0 %v433
      %v435 = vpop.xlane.xlu0 %434
      %v436 = vsel %vm303, %v420, 0.0
      %437 = vadd.xlane.f32.xlu0 %v436
      %v438 = vpop.xlane.xlu0 %437
      %v439 = vsel %vm303, %v421, 0.0
      %440 = vadd.xlane.f32.xlu0 %v439
      %v441 = vpop.xlane.xlu0 %440
      %v442 = vsel %vm303, %v422, 0.0
      %443 = vadd.xlane.f32.xlu0 %v442
      %v444 = vpop.xlane.xlu0 %443
      %v445 = vsel %vm303, %v423, 0.0
      %446 = vadd.xlane.f32.xlu0 %v445
      %v447 = vpop.xlane.xlu0 %446
      %v448 = vadd.f32 %v394, %v426
      %v449 = vadd.f32 %v397, %v429
      %v450 = vadd.f32 %v400, %v432
      %v451 = vadd.f32 %v403, %v435
      %v452 = vadd.f32 %v406, %v438
      %v453 = vadd.f32 %v409, %v441
      %v454 = vadd.f32 %v412, %v444
      %v455 = vadd.f32 %v415, %v447
      %v456 = vmul.f32 %v448, 0.015625
      %v457 = vmul.f32 %v449, 0.015625
      %v458 = vmul.f32 %v450, 0.015625
      %v459 = vmul.f32 %v451, 0.015625
      %v460 = vmul.f32 %v452, 0.015625
      %v461 = vmul.f32 %v453, 0.015625
      %v462 = vmul.f32 %v454, 0.015625
      %v463 = vmul.f32 %v455, 0.015625
      %v464 = vadd.f32 %v456, 1e-05
      %v465 = vadd.f32 %v457, 1e-05
      %v466 = vadd.f32 %v458, 1e-05
      %v467 = vadd.f32 %v459, 1e-05
      %v468 = vadd.f32 %v460, 1e-05
      %v469 = vadd.f32 %v461, 1e-05
      %v470 = vadd.f32 %v462, 1e-05
      %v471 = vadd.f32 %v463, 1e-05
      %v472 = vrsqrt.pop %v464
      %v473 = vmul.f32 %v472, %v464
      %v474 = vmul.f32 %v473, %v472
      %v475 = vmul.f32 0.5, %v474
      %v476 = vsub.f32 1.5, %v475
      %v477 = vmul.f32 %v472, %v476
      %vm478 = vweird.f32 %v464
      %vm479 = vweird.f32 %v472
      %vm480 = vmor %vm478, %vm479
      %v481 = vsel %vm480, %v472, %v477
      %v482 = vrsqrt.pop %v465
      %v483 = vmul.f32 %v482, %v465
      %v484 = vmul.f32 %v483, %v482
      %v485 = vmul.f32 0.5, %v484
      %v486 = vsub.f32 1.5, %v485
      %v487 = vmul.f32 %v482, %v486
      %vm488 = vweird.f32 %v465
      %vm489 = vweird.f32 %v482
      %vm490 = vmor %vm488, %vm489
      %v491 = vsel %vm490, %v482, %v487
      %v492 = vrsqrt.pop %v466
      %v493 = vmul.f32 %v492, %v466
      %v494 = vmul.f32 %v493, %v492
      %v495 = vmul.f32 0.5, %v494
      %v496 = vsub.f32 1.5, %v495
      %v497 = vmul.f32 %v492, %v496
      %vm498 = vweird.f32 %v466
      %vm499 = vweird.f32 %v492
      %vm500 = vmor %vm498, %vm499
      %v501 = vsel %vm500, %v492, %v497
      %v502 = vrsqrt.pop %v467
      %v503 = vmul.f32 %v502, %v467
      %v504 = vmul.f32 %v503, %v502
      %v505 = vmul.f32 0.5, %v504
      %v506 = vsub.f32 1.5, %v505
      %v507 = vmul.f32 %v502, %v506
      %vm508 = vweird.f32 %v467
      %vm509 = vweird.f32 %v502
      %vm510 = vmor %vm508, %vm509
      %v511 = vsel %vm510, %v502, %v507
      %v512 = vrsqrt.pop %v468
      %v513 = vmul.f32 %v512, %v468
      %v514 = vmul.f32 %v513, %v512
      %v515 = vmul.f32 0.5, %v514
      %v516 = vsub.f32 1.5, %v515
      %v517 = vmul.f32 %v512, %v516
      %vm518 = vweird.f32 %v468
      %vm519 = vweird.f32 %v512
      %vm520 = vmor %vm518, %vm519
      %v521 = vsel %vm520, %v512, %v517
      %v522 = vrsqrt.pop %v469
      %v523 = vmul.f32 %v522, %v469
      %v524 = vmul.f32 %v523, %v522
      %v525 = vmul.f32 0.5, %v524
      %v526 = vsub.f32 1.5, %v525
      %v527 = vmul.f32 %v522, %v526
      %vm528 = vweird.f32 %v469
      %vm529 = vweird.f32 %v522
      %vm530 = vmor %vm528, %vm529
      %v531 = vsel %vm530, %v522, %v527
      %v532 = vrsqrt.pop %v470
      %v533 = vmul.f32 %v532, %v470
      %v534 = vmul.f32 %v533, %v532
      %v535 = vmul.f32 0.5, %v534
      %v536 = vsub.f32 1.5, %v535
      %v537 = vmul.f32 %v532, %v536
      %vm538 = vweird.f32 %v470
      %vm539 = vweird.f32 %v532
      %vm540 = vmor %vm538, %vm539
      %v541 = vsel %vm540, %v532, %v537
      %v542 = vrsqrt.pop %v471
      %v543 = vmul.f32 %v542, %v471
      %v544 = vmul.f32 %v543, %v542
      %v545 = vmul.f32 0.5, %v544
      %v546 = vsub.f32 1.5, %v545
      %v547 = vmul.f32 %v542, %v546
      %vm548 = vweird.f32 %v471
      %vm549 = vweird.f32 %v542
      %vm550 = vmor %vm548, %vm549
      %v551 = vsel %vm550, %v542, %v547
      %v552 = vmul.f32 %v368, %v481
      %v553 = vmul.f32 %v369, %v491
      %v554 = vmul.f32 %v370, %v501
      %v555 = vmul.f32 %v371, %v511
      %v556 = vmul.f32 %v372, %v521
      %v557 = vmul.f32 %v373, %v531
      %v558 = vmul.f32 %v374, %v541
      %v559 = vmul.f32 %v375, %v551
      %v560 = vld [vmem:[%s1] sm:$0x1]
      %v562 = vperm.slane %v560, 0
      %v564 = vmul.f32 %v552, %v562
      %v565 = vmul.f32 %v553, %v562
      %v566 = vmul.f32 %v554, %v562
      %v567 = vmul.f32 %v555, %v562
      %v568 = vmul.f32 %v556, %v562
      %v569 = vmul.f32 %v557, %v562
      %v570 = vmul.f32 %v558, %v562
      %v571 = vmul.f32 %v559, %v562
      %v572 = vld [vmem:[%s3] sm:$0x1]
      %v574 = vperm.slane %v572, 0
      %v576 = vadd.f32 %v564, %v574
      %v577 = vadd.f32 %v565, %v574
      %v578 = vadd.f32 %v566, %v574
      %v579 = vadd.f32 %v567, %v574
      %v580 = vadd.f32 %v568, %v574
      %v581 = vadd.f32 %v569, %v574
      %v582 = vadd.f32 %v570, %v574
      %v583 = vadd.f32 %v571, %v574
      %v584 = vmul.f32 %v376, %v481
      %v585 = vmul.f32 %v377, %v491
      %v586 = vmul.f32 %v378, %v501
      %v587 = vmul.f32 %v379, %v511
      %v588 = vmul.f32 %v380, %v521
      %v589 = vmul.f32 %v381, %v531
      %v590 = vmul.f32 %v382, %v541
      %v591 = vmul.f32 %v383, %v551
      %v592 = vld [vmem:[%s2] sm:$0x1]
      %v594 = vperm.slane %v592, 0
      %v596 = vmul.f32 %v584, %v594
      %v597 = vmul.f32 %v585, %v594
      %v598 = vmul.f32 %v586, %v594
      %v599 = vmul.f32 %v587, %v594
      %v600 = vmul.f32 %v588, %v594
      %v601 = vmul.f32 %v589, %v594
      %v602 = vmul.f32 %v590, %v594
      %v603 = vmul.f32 %v591, %v594
      %v604 = vld [vmem:[%s4] sm:$0x1]
      %v606 = vperm.slane %v604, 0
      %v608 = vadd.f32 %v596, %v606
      %v609 = vadd.f32 %v597, %v606
      %v610 = vadd.f32 %v598, %v606
      %v611 = vadd.f32 %v599, %v606
      %v612 = vadd.f32 %v600, %v606
      %v613 = vadd.f32 %v601, %v606
      %v614 = vadd.f32 %v602, %v606
      %v615 = vadd.f32 %v603, %v606
      %v616 = vpack.c.bf16 %v577, %v576
      %v617 = vpack.c.bf16 %v579, %v578
      %v618 = vpack.c.bf16 %v581, %v580
      %v619 = vpack.c.bf16 %v583, %v582
      %v620 = vld [vmem:[%s5] sm:$0xf]
      %v621 = vld [vmem:[%s5 + $0x4] sm:$0xf]
      %v622 = vld [vmem:[%s5 + $0x8] sm:$0xf]
      %v623 = vld [vmem:[%s5 + $0xc] sm:$0xf]
      %v624 = vpack.c.bf16 %v609, %v608
      %v625 = vpack.c.bf16 %v611, %v610
      %v626 = vpack.c.bf16 %v613, %v612
      %v627 = vpack.c.bf16 %v615, %v614
      %v628 = vld [vmem:[%s6] sm:$0xf]
      %v629 = vld [vmem:[%s6 + $0x4] sm:$0xf]
      %v630 = vld [vmem:[%s6 + $0x8] sm:$0xf]
      %v631 = vld [vmem:[%s6 + $0xc] sm:$0xf]
      %v636 = vunpack.c.l.b16 %v628
      %v637 = vunpack.c.l.b16 %v629
      %v638 = vunpack.c.l.b16 %v630
      %v639 = vunpack.c.l.b16 %v631
      %v640 = vpack.c.b16 %v637, %v636
      %v641 = vpack.c.b16 %v639, %v638
      %v645 = vsel %vm303, %v624, 0
      %v648 = vsel %vm303, %v625, 0
      %v651 = vsel %vm303, %v626, 0
      %v654 = vsel %vm303, %v627, 0
      %656 = vmatpush.bf16.msra.mxu0 0
      %657 = vmatpush.bf16.msra.mxu0 0
      %658 = vmatpush.bf16.msra.mxu0 0
      %659 = vmatpush.bf16.msra.mxu0 0
      %660 = vmatpush.bf16.msra.mxu0 0
      %661 = vmatpush.bf16.msra.mxu0 0
      %662 = vmatpush.bf16.msra.mxu0 %v641
      %663 = vmatpush.bf16.msra.mxu0 %v640
      %664 = vmatmul.bf16.gmra.mxu0 %v645
      %v665 = vpop.f32.mrf.mxu0
      %v666 = vadd.f32 0.0, %v665
      %v667 = vpop.f32.mrf.mxu0
      %v668 = vadd.f32 0.0, %v667
      %669 = vmatmul.bf16.gmra.mxu0 %v648
      %v670 = vpop.f32.mrf.mxu0
      %v671 = vadd.f32 0.0, %v670
      %v672 = vpop.f32.mrf.mxu0
      %v673 = vadd.f32 0.0, %v672
      %674 = vmatmul.bf16.gmra.mxu0 %v651
      %v675 = vpop.f32.mrf.mxu0
      %v676 = vadd.f32 0.0, %v675
      %v677 = vpop.f32.mrf.mxu0
      %v678 = vadd.f32 0.0, %v677
      %679 = vmatmul.bf16.gmra.mxu0 %v654
      %v680 = vpop.f32.mrf.mxu0
      %v681 = vadd.f32 0.0, %v680
      %v682 = vpop.f32.mrf.mxu0
      %v683 = vadd.f32 0.0, %v682
      %684 = vdwg.mxu0
      %v689 = vunpack.c.l.b16 %v620
      %v690 = vunpack.c.l.b16 %v621
      %v691 = vunpack.c.l.b16 %v622
      %v692 = vunpack.c.l.b16 %v623
      %v693 = vpack.c.b16 %v690, %v689
      %v694 = vpack.c.b16 %v692, %v691
      %v698 = vsel %vm303, %v616, 0
      %v701 = vsel %vm303, %v617, 0
      %v704 = vsel %vm303, %v618, 0
      %v707 = vsel %vm303, %v619, 0
      %709 = vmatpush.bf16.msra.mxu0 0
      %710 = vmatpush.bf16.msra.mxu0 0
      %711 = vmatpush.bf16.msra.mxu0 0
      %712 = vmatpush.bf16.msra.mxu0 0
      %713 = vmatpush.bf16.msra.mxu0 0
      %714 = vmatpush.bf16.msra.mxu0 0
      %715 = vmatpush.bf16.msra.mxu0 %v694
      %716 = vmatpush.bf16.msra.mxu0 %v693
      %717 = vmatmul.bf16.gmra.mxu0 %v698
      %v718 = vpop.f32.mrf.mxu0
      %v719 = vadd.f32 %v666, %v718
      %v720 = vpop.f32.mrf.mxu0
      %v721 = vadd.f32 %v668, %v720
      %722 = vmatmul.bf16.gmra.mxu0 %v701
      %v723 = vpop.f32.mrf.mxu0
      %v724 = vadd.f32 %v671, %v723
      %v725 = vpop.f32.mrf.mxu0
      %v726 = vadd.f32 %v673, %v725
      %727 = vmatmul.bf16.gmra.mxu0 %v704
      %v728 = vpop.f32.mrf.mxu0
      %v729 = vadd.f32 %v676, %v728
      %v730 = vpop.f32.mrf.mxu0
      %v731 = vadd.f32 %v678, %v730
      %732 = vmatmul.bf16.gmra.mxu0 %v707
      %v733 = vpop.f32.mrf.mxu0
      %v734 = vadd.f32 %v681, %v733
      %v735 = vpop.f32.mrf.mxu0
      %v736 = vadd.f32 %v683, %v735
      %737 = vdwg.mxu0
      %738 = vst.msk [vmem:[%s283] sm:$0xff] %vm303, %v719
      %739 = vst.msk [vmem:[%s283 + $0x8] sm:$0xff] %vm303, %v721
      %740 = vst.msk [vmem:[%s283 + $0x10] sm:$0xff] %vm303, %v724
      %741 = vst.msk [vmem:[%s283 + $0x18] sm:$0xff] %vm303, %v726
      %742 = vst.msk [vmem:[%s283 + $0x20] sm:$0xff] %vm303, %v729
      %743 = vst.msk [vmem:[%s283 + $0x28] sm:$0xff] %vm303, %v731
      %744 = vst.msk [vmem:[%s283 + $0x30] sm:$0xff] %vm303, %v734
      %745 = vst.msk [vmem:[%s283 + $0x38] sm:$0xff] %vm303, %v736
      %s746 = smul.u32 8, %s18
      %p747 = scmp.lt.s32.totalorder %s746, 15
      %s748 = scalar_select %p747, %s746, 15
      %s749 = smul.addr %s748, 8
      %s750 = scalar_lea.vmem %s7, %s749
      // Predicated region
      $region49: #{patch_merging.1} parent=47 // pred_check
        %p751 = pneg %p188
      $region50: #{patch_merging.1} parent=47 // pred_check_branch
        %753 = sbr.rel (%p751) target = $region52
      $region51: #{patch_merging.1} parent=47 // pred_region
        %s754 = smul.u32 8, %s18
      $region52: #{patch_merging.1} parent=47 // pred_fallthru
        _
    $region48: #{patch_merging.1} parent=5 // pred_fallthru
      _
    %p755 = scmp.le.s32.totalorder 2, %s13
    // Predicated region
    $region53: #{patch_merging.1} parent=5 // pred_check
      %p756 = pneg %p755
    $region54: #{patch_merging.1} parent=5 // pred_check_branch
      %758 = sbr.rel (%p756) target = $region56
    $region55: #{patch_merging.1} parent=5 // pred_region
      %s759 = ssub.s32 %s13, 2
      // Predicated region
      $region57: #{patch_merging.1} parent=55 // pred_check
        %p760 = pneg %p194
      $region58: #{patch_merging.1} parent=55 // pred_check_branch
        %762 = sbr.rel (%p760) target = $region60
      $region59: #{patch_merging.1} parent=55 // pred_region
        %s763 = smul.u32 8, %s19
        %p764 = scmp.lt.s32.totalorder %s763, 15
        %s765 = scalar_select %p764, %s763, 15
        %s766 = smul.addr %s765, 8
        %s767 = scalar_lea.vmem %s7, %s766
      $region60: #{patch_merging.1} parent=55 // pred_fallthru
        _
    $region56: #{patch_merging.1} parent=5 // pred_fallthru
      _
  $region6: #{patch_merging.1} parent=0 // loop_footer
    %s17 = sadd.s32 1, %s13
  $region7: #{patch_merging.1} parent=0 // loop_footer_branch
    %12 = sbr.rel target = $region3
  $region8: #{patch_merging.1} parent=0 // loop_exit
    _

// kernel: patch_merging.1
$region0: #{patch_merging.1}
  #allocation0 [shape = 'u32[]', space=smem, size = 0x4, offset = 0x4, fixed_abs, tag = 'smem constant byte address 0x4 - core index']
  #allocation1 [shape = 'u32[72,128]{1,0:T(1,128)}', space=vmem, size = 0x9000, scoped, tag = 'internal scratch']
  %s0 = inlined_call_operand.vmem [shape: f32[16,2,8,32], index: 0, kind: input, shape index: {}]
  %s1 = inlined_call_operand.vmem [shape: f32[1,32], index: 1, kind: input, shape index: {}]
  %s2 = inlined_call_operand.vmem [shape: f32[1,32], index: 2, kind: input, shape index: {}]
  %s3 = inlined_call_operand.vmem [shape: f32[1,32], index: 3, kind: input, shape index: {}]
  %s4 = inlined_call_operand.vmem [shape: f32[1,32], index: 4, kind: input, shape index: {}]
  %s5 = inlined_call_operand.vmem [shape: bf16[32,32], index: 5, kind: input, shape index: {}]
  %s6 = inlined_call_operand.vmem [shape: bf16[32,32], index: 6, kind: input, shape index: {}]
  %s7 = inlined_call_operand.vmem [shape: f32[16,8,32], index: 7, kind: output, shape index: {}]
  %s8 = sld [smem:[#allocation0]]
  $region61: #{patch_merging.1} parent=0
    _
  %s10 = ssub.s32 1, %s8
  %s11 = scalar_select 0, %s10, %s8
  loop: start=0, step=1, limit=4
  $region2: #{patch_merging.1} parent=0 // loop_pre_header
    _
  $region3: #{patch_merging.1} parent=0 // loop_header
    %s13 = sphi 0, %s17
    %p14 = scmp.ge.s32.totalorder %s13, 4
    %s23 = sphi 0, %s25
    %s26 = sphi 0, %s23
    %s27 = sphi 0, %s26
    %s43 = sphi 0, %s27
    %s47 = sphi 0, %s47
    %s49 = sphi 0, %s47
    %s50 = sphi 0, %s49
    %s64 = sphi 0, %s50
    %s68 = sphi 0, %s68
    %s70 = sphi 0, %s68
    %s71 = sphi 0, %s70
    %s85 = sphi 0, %s71
    %s89 = sphi 0, %s89
    %s91 = sphi 0, %s89
    %s92 = sphi 0, %s91
    %s106 = sphi 0, %s92
    %s110 = sphi 0, %s110
    %s112 = sphi 0, %s110
    %s113 = sphi 0, %s112
    %s127 = sphi 0, %s113
    %s131 = sphi 0, %s131
    %s133 = sphi 0, %s131
    %s134 = sphi 0, %s133
    %s148 = sphi 0, %s134
    %s152 = sphi 0, %s152
    %s154 = sphi 0, %s152
    %s155 = sphi 0, %s154
    %s169 = sphi 0, %s155
    %s175 = sphi 0, %s177
    %s178 = sphi 0, %s175
    %s179 = sphi 0, %s178
    %s195 = sphi 0, %s179
  $region4: #{patch_merging.1} parent=0 // loop_header_branch
    %16 = sbr.rel (%p14) target = $region8
  $region5: #{patch_merging.1} parent=0 // loop_body
    %s18 = ssub.s32 %s13, 1
    %s19 = ssub.s32 %s13, 2
    %s20 = sadd.s32 %s13, 1
    %s21 = ssub.s32 %s13, %s20
    %p22 = scmp.eq.s32.totalorder %s21, 0
    %s24 = sadd.s32 %s23, 1
    %s25 = scalar_select %p22, %s23, %s24
    %p28 = pneg %p22
    %p29 = scmp.eq.s32.totalorder %s13, 1
    %p30 = por %p28, %p29
    %p31 = scmp.ne.s32.totalorder %s23, %s26
    %p32 = scmp.eq.s32.totalorder %s13, 0
    %p33 = por %p31, %p32
    %p34 = scmp.ne.s32.totalorder %s23, %s26
    %p35 = scmp.eq.s32.totalorder %s18, 1
    %p36 = por %p34, %p35
    %p37 = scmp.ne.s32.totalorder %s26, %s27
    %p38 = scmp.eq.s32.totalorder %s18, 0
    %p39 = por %p37, %p38
    %p40 = scmp.ne.s32.totalorder %s26, %s27
    %p41 = scmp.eq.s32.totalorder %s19, 1
    %p42 = por %p40, %p41
    %p44 = scmp.ne.s32.totalorder %s27, %s43
    %p45 = scmp.eq.s32.totalorder %s19, 0
    %p46 = por %p44, %p45
    %s48 = sadd.s32 %s47, 1
    %p51 = scmp.eq.s32.totalorder %s13, 1
    %p52 = scmp.ne.s32.totalorder %s47, %s49
    %p53 = scmp.eq.s32.totalorder %s13, 0
    %p54 = por %p52, %p53
    %p55 = scmp.ne.s32.totalorder %s47, %s49
    %p56 = scmp.eq.s32.totalorder %s18, 1
    %p57 = por %p55, %p56
    %p58 = scmp.ne.s32.totalorder %s49, %s50
    %p59 = scmp.eq.s32.totalorder %s18, 0
    %p60 = por %p58, %p59
    %p61 = scmp.ne.s32.totalorder %s49, %s50
    %p62 = scmp.eq.s32.totalorder %s19, 1
    %p63 = por %p61, %p62
    %p65 = scmp.ne.s32.totalorder %s50, %s64
    %p66 = scmp.eq.s32.totalorder %s19, 0
    %p67 = por %p65, %p66
    %s69 = sadd.s32 %s68, 1
    %p72 = scmp.eq.s32.totalorder %s13, 1
    %p73 = scmp.ne.s32.totalorder %s68, %s70
    %p74 = scmp.eq.s32.totalorder %s13, 0
    %p75 = por %p73, %p74
    %p76 = scmp.ne.s32.totalorder %s68, %s70
    %p77 = scmp.eq.s32.totalorder %s18, 1
    %p78 = por %p76, %p77
    %p79 = scmp.ne.s32.totalorder %s70, %s71
    %p80 = scmp.eq.s32.totalorder %s18, 0
    %p81 = por %p79, %p80
    %p82 = scmp.ne.s32.totalorder %s70, %s71
    %p83 = scmp.eq.s32.totalorder %s19, 1
    %p84 = por %p82, %p83
    %p86 = scmp.ne.s32.totalorder %s71, %s85
    %p87 = scmp.eq.s32.totalorder %s19, 0
    %p88 = por %p86, %p87
    %s90 = sadd.s32 %s89, 1
    %p93 = scmp.eq.s32.totalorder %s13, 1
    %p94 = scmp.ne.s32.totalorder %s89, %s91
    %p95 = scmp.eq.s32.totalorder %s13, 0
    %p96 = por %p94, %p95
    %p97 = scmp.ne.s32.totalorder %s89, %s91
    %p98 = scmp.eq.s32.totalorder %s18, 1
    %p99 = por %p97, %p98
    %p100 = scmp.ne.s32.totalorder %s91, %s92
    %p101 = scmp.eq.s32.totalorder %s18, 0
    %p102 = por %p100, %p101
    %p103 = scmp.ne.s32.totalorder %s91, %s92
    %p104 = scmp.eq.s32.totalorder %s19, 1
    %p105 = por %p103, %p104
    %p107 = scmp.ne.s32.totalorder %s92, %s106
    %p108 = scmp.eq.s32.totalorder %s19, 0
    %p109 = por %p107, %p108
    %s111 = sadd.s32 %s110, 1
    %p114 = scmp.eq.s32.totalorder %s13, 1
    %p115 = scmp.ne.s32.totalorder %s110, %s112
    %p116 = scmp.eq.s32.totalorder %s13, 0
    %p117 = por %p115, %p116
    %p118 = scmp.ne.s32.totalorder %s110, %s112
    %p119 = scmp.eq.s32.totalorder %s18, 1
    %p120 = por %p118, %p119
    %p121 = scmp.ne.s32.totalorder %s112, %s113
    %p122 = scmp.eq.s32.totalorder %s18, 0
    %p123 = por %p121, %p122
    %p124 = scmp.ne.s32.totalorder %s112, %s113
    %p125 = scmp.eq.s32.totalorder %s19, 1
    %p126 = por %p124, %p125
    %p128 = scmp.ne.s32.totalorder %s113, %s127
    %p129 = scmp.eq.s32.totalorder %s19, 0
    %p130 = por %p128, %p129
    %s132 = sadd.s32 %s131, 1
    %p135 = scmp.eq.s32.totalorder %s13, 1
    %p136 = scmp.ne.s32.totalorder %s131, %s133
    %p137 = scmp.eq.s32.totalorder %s13, 0
    %p138 = por %p136, %p137
    %p139 = scmp.ne.s32.totalorder %s131, %s133
    %p140 = scmp.eq.s32.totalorder %s18, 1
    %p141 = por %p139, %p140
    %p142 = scmp.ne.s32.totalorder %s133, %s134
    %p143 = scmp.eq.s32.totalorder %s18, 0
    %p144 = por %p142, %p143
    %p145 = scmp.ne.s32.totalorder %s133, %s134
    %p146 = scmp.eq.s32.totalorder %s19, 1
    %p147 = por %p145, %p146
    %p149 = scmp.ne.s32.totalorder %s134, %s148
    %p150 = scmp.eq.s32.totalorder %s19, 0
    %p151 = por %p149, %p150
    %s153 = sadd.s32 %s152, 1
    %p156 = scmp.eq.s32.totalorder %s13, 1
    %p157 = scmp.ne.s32.totalorder %s152, %s154
    %p158 = scmp.eq.s32.totalorder %s13, 0
    %p159 = por %p157, %p158
    %p160 = scmp.ne.s32.totalorder %s152, %s154
    %p161 = scmp.eq.s32.totalorder %s18, 1
    %p162 = por %p160, %p161
    %p163 = scmp.ne.s32.totalorder %s154, %s155
    %p164 = scmp.eq.s32.totalorder %s18, 0
    %p165 = por %p163, %p164
    %p166 = scmp.ne.s32.totalorder %s154, %s155
    %p167 = scmp.eq.s32.totalorder %s19, 1
    %p168 = por %p166, %p167
    %p170 = scmp.ne.s32.totalorder %s155, %s169
    %p171 = scmp.eq.s32.totalorder %s19, 0
    %p172 = por %p170, %p171
    %s173 = ssub.s32 %s13, %s20
    %p174 = scmp.eq.s32.totalorder %s173, 0
    %s176 = sadd.s32 %s175, 1
    %s177 = scalar_select %p174, %s175, %s176
    %p180 = pneg %p174
    %p181 = scmp.eq.s32.totalorder %s13, 1
    %p182 = por %p180, %p181
    %p183 = scmp.ne.s32.totalorder %s175, %s178
    %p184 = scmp.eq.s32.totalorder %s13, 0
    %p185 = por %p183, %p184
    %p186 = scmp.ne.s32.totalorder %s175, %s178
    %p187 = scmp.eq.s32.totalorder %s18, 1
    %p188 = por %p186, %p187
    %p189 = scmp.ne.s32.totalorder %s178, %s179
    %p190 = scmp.eq.s32.totalorder %s18, 0
    %p191 = por %p189, %p190
    %p192 = scmp.ne.s32.totalorder %s178, %s179
    %p193 = scmp.eq.s32.totalorder %s19, 1
    %p194 = por %p192, %p193
    %p196 = scmp.ne.s32.totalorder %s179, %s195
    %p197 = scmp.eq.s32.totalorder %s19, 0
    %p198 = por %p196, %p197
    %p199 = scmp.le.s32.totalorder 1, %s13
    %p200 = scmp.lt.s32.totalorder %s13, 3
    %p201 = pnand %p199, %p200
    %p202 = pneg %p201
    // Predicated region
    $region9: #{patch_merging.1} parent=5 // pred_check
      _
    $region10: #{patch_merging.1} parent=5 // pred_check_branch
      %204 = sbr.rel (%p201) target = $region12
    $region11: #{patch_merging.1} parent=5 // pred_region
      %s205 = ssub.s32 %s13, 1
      // Predicated region
      $region13: #{patch_merging.1} parent=11 // pred_check
        %p206 = pneg %p60
      $region14: #{patch_merging.1} parent=11 // pred_check_branch
        %208 = sbr.rel (%p206) target = $region16
      $region15: #{patch_merging.1} parent=11 // pred_region
        _
      $region16: #{patch_merging.1} parent=11 // pred_fallthru
        _
      // Predicated region
      $region17: #{patch_merging.1} parent=11 // pred_check
        %p209 = pneg %p81
      $region18: #{patch_merging.1} parent=11 // pred_check_branch
        %211 = sbr.rel (%p209) target = $region20
      $region19: #{patch_merging.1} parent=11 // pred_region
        _
      $region20: #{patch_merging.1} parent=11 // pred_fallthru
        _
      // Predicated region
      $region21: #{patch_merging.1} parent=11 // pred_check
        %p212 = pneg %p102
      $region22: #{patch_merging.1} parent=11 // pred_check_branch
        %214 = sbr.rel (%p212) target = $region24
      $region23: #{patch_merging.1} parent=11 // pred_region
        _
      $region24: #{patch_merging.1} parent=11 // pred_fallthru
        _
      // Predicated region
      $region25: #{patch_merging.1} parent=11 // pred_check
        %p215 = pneg %p123
      $region26: #{patch_merging.1} parent=11 // pred_check_branch
        %217 = sbr.rel (%p215) target = $region28
      $region27: #{patch_merging.1} parent=11 // pred_region
        _
      $region28: #{patch_merging.1} parent=11 // pred_fallthru
        _
      // Predicated region
      $region29: #{patch_merging.1} parent=11 // pred_check
        %p218 = pneg %p144
      $region30: #{patch_merging.1} parent=11 // pred_check_branch
        %220 = sbr.rel (%p218) target = $region32
      $region31: #{patch_merging.1} parent=11 // pred_region
        _
      $region32: #{patch_merging.1} parent=11 // pred_fallthru
        _
      // Predicated region
      $region33: #{patch_merging.1} parent=11 // pred_check
        %p221 = pneg %p165
      $region34: #{patch_merging.1} parent=11 // pred_check_branch
        %223 = sbr.rel (%p221) target = $region36
      $region35: #{patch_merging.1} parent=11 // pred_region
        _
      $region36: #{patch_merging.1} parent=11 // pred_fallthru
        _
    $region12: #{patch_merging.1} parent=5 // pred_fallthru
      _
    %p224 = scmp.lt.s32.totalorder %s13, 2
    // Predicated region
    $region37: #{patch_merging.1} parent=5 // pred_check
      %p225 = pneg %p224
    $region38: #{patch_merging.1} parent=5 // pred_check_branch
      %227 = sbr.rel (%p225) target = $region40
    $region39: #{patch_merging.1} parent=5 // pred_region
      // Predicated region
      $region41: #{patch_merging.1} parent=39 // pred_check
        %p228 = pneg %p33
      $region42: #{patch_merging.1} parent=39 // pred_check_branch
        %230 = sbr.rel (%p228) target = $region44
      $region43: #{patch_merging.1} parent=39 // pred_region
        %s231 = smul.u32 8, %s13
        %p232 = scmp.lt.s32.totalorder %s231, 15
        %s233 = scalar_select %p232, %s231, 15
        %s234 = smul.addr %s233, 2
        %s235 = smul.addr %s234, 8
        %s236 = scalar_lea.vmem %s0, %s235
        %s237 = smul.u32 8, %s13
      $region44: #{patch_merging.1} parent=39 // pred_fallthru
        _
    $region40: #{patch_merging.1} parent=5 // pred_fallthru
      _
    %p238 = scmp.le.s32.totalorder 1, %s13
    %p239 = scmp.lt.s32.totalorder %s13, 3
    %p240 = pnand %p238, %p239
    %p241 = pneg %p240
    // Predicated region
    $region45: #{patch_merging.1} parent=5 // pred_check
      _
    $region46: #{patch_merging.1} parent=5 // pred_check_branch
      %243 = sbr.rel (%p240) target = $region48
    $region47: #{patch_merging.1} parent=5 // pred_region
      %s244 = ssub.s32 %s13, 1
      %s245 = smul.u32 8, %s18
      %p246 = scmp.lt.s32.totalorder %s245, 15
      %s247 = scalar_select %p246, %s245, 15
      %s248 = smul.addr %s247, 2
      %s249 = smul.addr %s248, 8
      %s250 = scalar_lea.vmem %s0, %s249
      %p251 = pneg %p39
      %p252 = pneg %p36
      %p253 = pneg %p60
      %p254 = pneg %p57
      %p255 = pneg %p81
      %p256 = pneg %p78
      %p257 = pneg %p102
      %p258 = pneg %p99
      %p259 = pneg %p123
      %p260 = pneg %p120
      %p261 = pneg %p144
      %p262 = pneg %p141
      %p263 = pneg %p165
      %p264 = pneg %p162
      %p265 = pneg %p191
      %p266 = pneg %p188
      %s267 = smul.u32 8, %s18
      %p268 = scmp.lt.s32.totalorder %s267, 15
      %s269 = scalar_select %p268, %s267, 15
      %s270 = smul.addr %s269, 8
      %s271 = scalar_lea.vmem %s7, %s270
      %s272 = smul.u32 8, %s18
      %p273 = scmp.lt.s32.totalorder %s272, 15
      %s274 = scalar_select %p273, %s272, 15
      %s275 = smul.addr %s274, 2
      %s276 = smul.addr %s275, 8
      %s277 = scalar_lea.vmem %s0, %s276
      %s278 = smul.u32 8, %s18
      %s279 = smul.u32 8, %s18
      %p280 = scmp.lt.s32.totalorder %s279, 15
      %s281 = scalar_select %p280, %s279, 15
      %s282 = smul.addr %s281, 8
      %s283 = scalar_lea.vmem %s7, %s282
      %s284 = smul.u32 8, %s18
      %v286 = vld [vmem:[%s277] sm:$0xff]
      %v287 = vld [vmem:[%s277 + $0x10] sm:$0xff]
      %v288 = vld [vmem:[%s277 + $0x20] sm:$0xff]
      %v289 = vld [vmem:[%s277 + $0x30] sm:$0xff]
      %v290 = vld [vmem:[%s277 + $0x40] sm:$0xff]
      %v291 = vld [vmem:[%s277 + $0x50] sm:$0xff]
      %v292 = vld [vmem:[%s277 + $0x60] sm:$0xff]
      %v293 = vld [vmem:[%s277 + $0x70] sm:$0xff]
      %s294 = scalar_lea.vmem %s277, 8
      %v295 = vld [vmem:[%s294] sm:$0xff]
      %v296 = vld [vmem:[%s294 + $0x10] sm:$0xff]
      %v297 = vld [vmem:[%s294 + $0x20] sm:$0xff]
      %v298 = vld [vmem:[%s294 + $0x30] sm:$0xff]
      %v299 = vld [vmem:[%s294 + $0x40] sm:$0xff]
      %v300 = vld [vmem:[%s294 + $0x50] sm:$0xff]
      %v301 = vld [vmem:[%s294 + $0x60] sm:$0xff]
      %v302 = vld [vmem:[%s294 + $0x70] sm:$0xff]
      %vm303 = vcmask 261120
      %v304 = vsel %vm303, %v286, 0.0
      %305 = vadd.xlane.f32.xlu0 %v304
      %v306 = vpop.xlane.xlu0 %305
      %v307 = vsel %vm303, %v287, 0.0
      %308 = vadd.xlane.f32.xlu0 %v307
      %v309 = vpop.xlane.xlu0 %308
      %v310 = vsel %vm303, %v288, 0.0
      %311 = vadd.xlane.f32.xlu0 %v310
      %v312 = vpop.xlane.xlu0 %311
      %v313 = vsel %vm303, %v289, 0.0
      %314 = vadd.xlane.f32.xlu0 %v313
      %v315 = vpop.xlane.xlu0 %314
      %v316 = vsel %vm303, %v290, 0.0
      %317 = vadd.xlane.f32.xlu0 %v316
      %v318 = vpop.xlane.xlu0 %317
      %v319 = vsel %vm303, %v291, 0.0
      %320 = vadd.xlane.f32.xlu0 %v319
      %v321 = vpop.xlane.xlu0 %320
      %v322 = vsel %vm303, %v292, 0.0
      %323 = vadd.xlane.f32.xlu0 %v322
      %v324 = vpop.xlane.xlu0 %323
      %v325 = vsel %vm303, %v293, 0.0
      %326 = vadd.xlane.f32.xlu0 %v325
      %v327 = vpop.xlane.xlu0 %326
      %v328 = vsel %vm303, %v295, 0.0
      %329 = vadd.xlane.f32.xlu0 %v328
      %v330 = vpop.xlane.xlu0 %329
      %v331 = vsel %vm303, %v296, 0.0
      %332 = vadd.xlane.f32.xlu0 %v331
      %v333 = vpop.xlane.xlu0 %332
      %v334 = vsel %vm303, %v297, 0.0
      %335 = vadd.xlane.f32.xlu0 %v334
      %v336 = vpop.xlane.xlu0 %335
      %v337 = vsel %vm303, %v298, 0.0
      %338 = vadd.xlane.f32.xlu0 %v337
      %v339 = vpop.xlane.xlu0 %338
      %v340 = vsel %vm303, %v299, 0.0
      %341 = vadd.xlane.f32.xlu0 %v340
      %v342 = vpop.xlane.xlu0 %341
      %v343 = vsel %vm303, %v300, 0.0
      %344 = vadd.xlane.f32.xlu0 %v343
      %v345 = vpop.xlane.xlu0 %344
      %v346 = vsel %vm303, %v301, 0.0
      %347 = vadd.xlane.f32.xlu0 %v346
      %v348 = vpop.xlane.xlu0 %347
      %v349 = vsel %vm303, %v302, 0.0
      %350 = vadd.xlane.f32.xlu0 %v349
      %v351 = vpop.xlane.xlu0 %350
      %v352 = vadd.f32 %v306, %v330
      %v353 = vadd.f32 %v309, %v333
      %v354 = vadd.f32 %v312, %v336
      %v355 = vadd.f32 %v315, %v339
      %v356 = vadd.f32 %v318, %v342
      %v357 = vadd.f32 %v321, %v345
      %v358 = vadd.f32 %v324, %v348
      %v359 = vadd.f32 %v327, %v351
      %v360 = vmul.f32 %v352, 0.015625
      %v361 = vmul.f32 %v353, 0.015625
      %v362 = vmul.f32 %v354, 0.015625
      %v363 = vmul.f32 %v355, 0.015625
      %v364 = vmul.f32 %v356, 0.015625
      %v365 = vmul.f32 %v357, 0.015625
      %v366 = vmul.f32 %v358, 0.015625
      %v367 = vmul.f32 %v359, 0.015625
      %v368 = vsub.f32 %v286, %v360
      %v369 = vsub.f32 %v287, %v361
      %v370 = vsub.f32 %v288, %v362
      %v371 = vsub.f32 %v289, %v363
      %v372 = vsub.f32 %v290, %v364
      %v373 = vsub.f32 %v291, %v365
      %v374 = vsub.f32 %v292, %v366
      %v375 = vsub.f32 %v293, %v367
      %v376 = vsub.f32 %v295, %v360
      %v377 = vsub.f32 %v296, %v361
      %v378 = vsub.f32 %v297, %v362
      %v379 = vsub.f32 %v298, %v363
      %v380 = vsub.f32 %v299, %v364
      %v381 = vsub.f32 %v300, %v365
      %v382 = vsub.f32 %v301, %v366
      %v383 = vsub.f32 %v302, %v367
      %v384 = vmul.f32 %v368, %v368
      %v385 = vmul.f32 %v369, %v369
      %v386 = vmul.f32 %v370, %v370
      %v387 = vmul.f32 %v371, %v371
      %v388 = vmul.f32 %v372, %v372
      %v389 = vmul.f32 %v373, %v373
      %v390 = vmul.f32 %v374, %v374
      %v391 = vmul.f32 %v375, %v375
      %v392 = vsel %vm303, %v384, 0.0
      %393 = vadd.xlane.f32.xlu0 %v392
      %v394 = vpop.xlane.xlu0 %393
      %v395 = vsel %vm303, %v385, 0.0
      %396 = vadd.xlane.f32.xlu0 %v395
      %v397 = vpop.xlane.xlu0 %396
      %v398 = vsel %vm303, %v386, 0.0
      %399 = vadd.xlane.f32.xlu0 %v398
      %v400 = vpop.xlane.xlu0 %399
      %v401 = vsel %vm303, %v387, 0.0
      %402 = vadd.xlane.f32.xlu0 %v401
      %v403 = vpop.xlane.xlu0 %402
      %v404 = vsel %vm303, %v388, 0.0
      %405 = vadd.xlane.f32.xlu0 %v404
      %v406 = vpop.xlane.xlu0 %405
      %v407 = vsel %vm303, %v389, 0.0
      %408 = vadd.xlane.f32.xlu0 %v407
      %v409 = vpop.xlane.xlu0 %408
      %v410 = vsel %vm303, %v390, 0.0
      %411 = vadd.xlane.f32.xlu0 %v410
      %v412 = vpop.xlane.xlu0 %411
      %v413 = vsel %vm303, %v391, 0.0
      %414 = vadd.xlane.f32.xlu0 %v413
      %v415 = vpop.xlane.xlu0 %414
      %v416 = vmul.f32 %v376, %v376
      %v417 = vmul.f32 %v377, %v377
      %v418 = vmul.f32 %v378, %v378
      %v419 = vmul.f32 %v379, %v379
      %v420 = vmul.f32 %v380, %v380
      %v421 = vmul.f32 %v381, %v381
      %v422 = vmul.f32 %v382, %v382
      %v423 = vmul.f32 %v383, %v383
      %v424 = vsel %vm303, %v416, 0.0
      %425 = vadd.xlane.f32.xlu0 %v424
      %v426 = vpop.xlane.xlu0 %425
      %v427 = vsel %vm303, %v417, 0.0
      %428 = vadd.xlane.f32.xlu0 %v427
      %v429 = vpop.xlane.xlu0 %428
      %v430 = vsel %vm303, %v418, 0.0
      %431 = vadd.xlane.f32.xlu0 %v430
      %v432 = vpop.xlane.xlu0 %431
      %v433 = vsel %vm303, %v419, 0.0
      %434 = vadd.xlane.f32.xlu0 %v433
      %v435 = vpop.xlane.xlu0 %434
      %v436 = vsel %vm303, %v420, 0.0
      %437 = vadd.xlane.f32.xlu0 %v436
      %v438 = vpop.xlane.xlu0 %437
      %v439 = vsel %vm303, %v421, 0.0
      %440 = vadd.xlane.f32.xlu0 %v439
      %v441 = vpop.xlane.xlu0 %440
      %v442 = vsel %vm303, %v422, 0.0
      %443 = vadd.xlane.f32.xlu0 %v442
      %v444 = vpop.xlane.xlu0 %443
      %v445 = vsel %vm303, %v423, 0.0
      %446 = vadd.xlane.f32.xlu0 %v445
      %v447 = vpop.xlane.xlu0 %446
      %v448 = vadd.f32 %v394, %v426
      %v449 = vadd.f32 %v397, %v429
      %v450 = vadd.f32 %v400, %v432
      %v451 = vadd.f32 %v403, %v435
      %v452 = vadd.f32 %v406, %v438
      %v453 = vadd.f32 %v409, %v441
      %v454 = vadd.f32 %v412, %v444
      %v455 = vadd.f32 %v415, %v447
      %v456 = vmul.f32 %v448, 0.015625
      %v457 = vmul.f32 %v449, 0.015625
      %v458 = vmul.f32 %v450, 0.015625
      %v459 = vmul.f32 %v451, 0.015625
      %v460 = vmul.f32 %v452, 0.015625
      %v461 = vmul.f32 %v453, 0.015625
      %v462 = vmul.f32 %v454, 0.015625
      %v463 = vmul.f32 %v455, 0.015625
      %v464 = vadd.f32 %v456, 1e-05
      %v465 = vadd.f32 %v457, 1e-05
      %v466 = vadd.f32 %v458, 1e-05
      %v467 = vadd.f32 %v459, 1e-05
      %v468 = vadd.f32 %v460, 1e-05
      %v469 = vadd.f32 %v461, 1e-05
      %v470 = vadd.f32 %v462, 1e-05
      %v471 = vadd.f32 %v463, 1e-05
      %v472 = vrsqrt.pop %v464
      %v473 = vmul.f32 %v472, %v464
      %v474 = vmul.f32 %v473, %v472
      %v475 = vmul.f32 0.5, %v474
      %v476 = vsub.f32 1.5, %v475
      %v477 = vmul.f32 %v472, %v476
      %vm478 = vweird.f32 %v464
      %vm479 = vweird.f32 %v472
      %vm480 = vmor %vm478, %vm479
      %v481 = vsel %vm480, %v472, %v477
      %v482 = vrsqrt.pop %v465
      %v483 = vmul.f32 %v482, %v465
      %v484 = vmul.f32 %v483, %v482
      %v485 = vmul.f32 0.5, %v484
      %v486 = vsub.f32 1.5, %v485
      %v487 = vmul.f32 %v482, %v486
      %vm488 = vweird.f32 %v465
      %vm489 = vweird.f32 %v482
      %vm490 = vmor %vm488, %vm489
      %v491 = vsel %vm490, %v482, %v487
      %v492 = vrsqrt.pop %v466
      %v493 = vmul.f32 %v492, %v466
      %v494 = vmul.f32 %v493, %v492
      %v495 = vmul.f32 0.5, %v494
      %v496 = vsub.f32 1.5, %v495
      %v497 = vmul.f32 %v492, %v496
      %vm498 = vweird.f32 %v466
      %vm499 = vweird.f32 %v492
      %vm500 = vmor %vm498, %vm499
      %v501 = vsel %vm500, %v492, %v497
      %v502 = vrsqrt.pop %v467
      %v503 = vmul.f32 %v502, %v467
      %v504 = vmul.f32 %v503, %v502
      %v505 = vmul.f32 0.5, %v504
      %v506 = vsub.f32 1.5, %v505
      %v507 = vmul.f32 %v502, %v506
      %vm508 = vweird.f32 %v467
      %vm509 = vweird.f32 %v502
      %vm510 = vmor %vm508, %vm509
      %v511 = vsel %vm510, %v502, %v507
      %v512 = vrsqrt.pop %v468
      %v513 = vmul.f32 %v512, %v468
      %v514 = vmul.f32 %v513, %v512
      %v515 = vmul.f32 0.5, %v514
      %v516 = vsub.f32 1.5, %v515
      %v517 = vmul.f32 %v512, %v516
      %vm518 = vweird.f32 %v468
      %vm519 = vweird.f32 %v512
      %vm520 = vmor %vm518, %vm519
      %v521 = vsel %vm520, %v512, %v517
      %v522 = vrsqrt.pop %v469
      %v523 = vmul.f32 %v522, %v469
      %v524 = vmul.f32 %v523, %v522
      %v525 = vmul.f32 0.5, %v524
      %v526 = vsub.f32 1.5, %v525
      %v527 = vmul.f32 %v522, %v526
      %vm528 = vweird.f32 %v469
      %vm529 = vweird.f32 %v522
      %vm530 = vmor %vm528, %vm529
      %v531 = vsel %vm530, %v522, %v527
      %v532 = vrsqrt.pop %v470
      %v533 = vmul.f32 %v532, %v470
      %v534 = vmul.f32 %v533, %v532
      %v535 = vmul.f32 0.5, %v534
      %v536 = vsub.f32 1.5, %v535
      %v537 = vmul.f32 %v532, %v536
      %vm538 = vweird.f32 %v470
      %vm539 = vweird.f32 %v532
      %vm540 = vmor %vm538, %vm539
      %v541 = vsel %vm540, %v532, %v537
      %v542 = vrsqrt.pop %v471
      %v543 = vmul.f32 %v542, %v471
      %v544 = vmul.f32 %v543, %v542
      %v545 = vmul.f32 0.5, %v544
      %v546 = vsub.f32 1.5, %v545
      %v547 = vmul.f32 %v542, %v546
      %vm548 = vweird.f32 %v471
      %vm549 = vweird.f32 %v542
      %vm550 = vmor %vm548, %vm549
      %v551 = vsel %vm550, %v542, %v547
      %v552 = vmul.f32 %v368, %v481
      %v553 = vmul.f32 %v369, %v491
      %v554 = vmul.f32 %v370, %v501
      %v555 = vmul.f32 %v371, %v511
      %v556 = vmul.f32 %v372, %v521
      %v557 = vmul.f32 %v373, %v531
      %v558 = vmul.f32 %v374, %v541
      %v559 = vmul.f32 %v375, %v551
      %v560 = vld [vmem:[%s1] sm:$0x1]
      %v562 = vperm.slane %v560, 0
      %v564 = vmul.f32 %v552, %v562
      %v565 = vmul.f32 %v553, %v562
      %v566 = vmul.f32 %v554, %v562
      %v567 = vmul.f32 %v555, %v562
      %v568 = vmul.f32 %v556, %v562
      %v569 = vmul.f32 %v557, %v562
      %v570 = vmul.f32 %v558, %v562
      %v571 = vmul.f32 %v559, %v562
      %v572 = vld [vmem:[%s3] sm:$0x1]
      %v574 = vperm.slane %v572, 0
      %v576 = vadd.f32 %v564, %v574
      %v577 = vadd.f32 %v565, %v574
      %v578 = vadd.f32 %v566, %v574
      %v579 = vadd.f32 %v567, %v574
      %v580 = vadd.f32 %v568, %v574
      %v581 = vadd.f32 %v569, %v574
      %v582 = vadd.f32 %v570, %v574
      %v583 = vadd.f32 %v571, %v574
      %v584 = vmul.f32 %v376, %v481
      %v585 = vmul.f32 %v377, %v491
      %v586 = vmul.f32 %v378, %v501
      %v587 = vmul.f32 %v379, %v511
      %v588 = vmul.f32 %v380, %v521
      %v589 = vmul.f32 %v381, %v531
      %v590 = vmul.f32 %v382, %v541
      %v591 = vmul.f32 %v383, %v551
      %v592 = vld [vmem:[%s2] sm:$0x1]
      %v594 = vperm.slane %v592, 0
      %v596 = vmul.f32 %v584, %v594
      %v597 = vmul.f32 %v585, %v594
      %v598 = vmul.f32 %v586, %v594
      %v599 = vmul.f32 %v587, %v594
      %v600 = vmul.f32 %v588, %v594
      %v601 = vmul.f32 %v589, %v594
      %v602 = vmul.f32 %v590, %v594
      %v603 = vmul.f32 %v591, %v594
      %v604 = vld [vmem:[%s4] sm:$0x1]
      %v606 = vperm.slane %v604, 0
      %v608 = vadd.f32 %v596, %v606
      %v609 = vadd.f32 %v597, %v606
      %v610 = vadd.f32 %v598, %v606
      %v611 = vadd.f32 %v599, %v606
      %v612 = vadd.f32 %v600, %v606
      %v613 = vadd.f32 %v601, %v606
      %v614 = vadd.f32 %v602, %v606
      %v615 = vadd.f32 %v603, %v606
      %v616 = vpack.c.bf16 %v577, %v576
      %v617 = vpack.c.bf16 %v579, %v578
      %v618 = vpack.c.bf16 %v581, %v580
      %v619 = vpack.c.bf16 %v583, %v582
      %v620 = vld [vmem:[%s5] sm:$0xf]
      %v621 = vld [vmem:[%s5 + $0x4] sm:$0xf]
      %v622 = vld [vmem:[%s5 + $0x8] sm:$0xf]
      %v623 = vld [vmem:[%s5 + $0xc] sm:$0xf]
      %v624 = vpack.c.bf16 %v609, %v608
      %v625 = vpack.c.bf16 %v611, %v610
      %v626 = vpack.c.bf16 %v613, %v612
      %v627 = vpack.c.bf16 %v615, %v614
      %v628 = vld [vmem:[%s6] sm:$0xf]
      %v629 = vld [vmem:[%s6 + $0x4] sm:$0xf]
      %v630 = vld [vmem:[%s6 + $0x8] sm:$0xf]
      %v631 = vld [vmem:[%s6 + $0xc] sm:$0xf]
      %v636 = vunpack.c.l.b16 %v628
      %v637 = vunpack.c.l.b16 %v629
      %v638 = vunpack.c.l.b16 %v630
      %v639 = vunpack.c.l.b16 %v631
      %v640 = vpack.c.b16 %v637, %v636
      %v641 = vpack.c.b16 %v639, %v638
      %v645 = vsel %vm303, %v624, 0
      %v648 = vsel %vm303, %v625, 0
      %v651 = vsel %vm303, %v626, 0
      %v654 = vsel %vm303, %v627, 0
      %656 = vmatpush.bf16.msra.mxu0 0
      %657 = vmatpush.bf16.msra.mxu0 0
      %658 = vmatpush.bf16.msra.mxu0 0
      %659 = vmatpush.bf16.msra.mxu0 0
      %660 = vmatpush.bf16.msra.mxu0 0
      %661 = vmatpush.bf16.msra.mxu0 0
      %662 = vmatpush.bf16.msra.mxu0 %v641
      %663 = vmatpush.bf16.msra.mxu0 %v640
      %664 = vmatmul.bf16.gmra.mxu0 %v645
      %v665 = vpop.f32.mrf.mxu0
      %v666 = vadd.f32 0.0, %v665
      %v667 = vpop.f32.mrf.mxu0
      %v668 = vadd.f32 0.0, %v667
      %669 = vmatmul.bf16.gmra.mxu0 %v648
      %v670 = vpop.f32.mrf.mxu0
      %v671 = vadd.f32 0.0, %v670
      %v672 = vpop.f32.mrf.mxu0
      %v673 = vadd.f32 0.0, %v672
      %674 = vmatmul.bf16.gmra.mxu0 %v651
      %v675 = vpop.f32.mrf.mxu0
      %v676 = vadd.f32 0.0, %v675
      %v677 = vpop.f32.mrf.mxu0
      %v678 = vadd.f32 0.0, %v677
      %679 = vmatmul.bf16.gmra.mxu0 %v654
      %v680 = vpop.f32.mrf.mxu0
      %v681 = vadd.f32 0.0, %v680
      %v682 = vpop.f32.mrf.mxu0
      %v683 = vadd.f32 0.0, %v682
      %684 = vdwg.mxu0
      %v689 = vunpack.c.l.b16 %v620
      %v690 = vunpack.c.l.b16 %v621
      %v691 = vunpack.c.l.b16 %v622
      %v692 = vunpack.c.l.b16 %v623
      %v693 = vpack.c.b16 %v690, %v689
      %v694 = vpack.c.b16 %v692, %v691
      %v698 = vsel %vm303, %v616, 0
      %v701 = vsel %vm303, %v617, 0
      %v704 = vsel %vm303, %v618, 0
      %v707 = vsel %vm303, %v619, 0
      %709 = vmatpush.bf16.msra.mxu0 0
      %710 = vmatpush.bf16.msra.mxu0 0
      %711 = vmatpush.bf16.msra.mxu0 0
      %712 = vmatpush.bf16.msra.mxu0 0
      %713 = vmatpush.bf16.msra.mxu0 0
      %714 = vmatpush.bf16.msra.mxu0 0
      %715 = vmatpush.bf16.msra.mxu0 %v694
      %716 = vmatpush.bf16.msra.mxu0 %v693
      %717 = vmatmul.bf16.gmra.mxu0 %v698
      %v718 = vpop.f32.mrf.mxu0
      %v719 = vadd.f32 %v666, %v718
      %v720 = vpop.f32.mrf.mxu0
      %v721 = vadd.f32 %v668, %v720
      %722 = vmatmul.bf16.gmra.mxu0 %v701
      %v723 = vpop.f32.mrf.mxu0
      %v724 = vadd.f32 %v671, %v723
      %v725 = vpop.f32.mrf.mxu0
      %v726 = vadd.f32 %v673, %v725
      %727 = vmatmul.bf16.gmra.mxu0 %v704
      %v728 = vpop.f32.mrf.mxu0
      %v729 = vadd.f32 %v676, %v728
      %v730 = vpop.f32.mrf.mxu0
      %v731 = vadd.f32 %v678, %v730
      %732 = vmatmul.bf16.gmra.mxu0 %v707
      %v733 = vpop.f32.mrf.mxu0
      %v734 = vadd.f32 %v681, %v733
      %v735 = vpop.f32.mrf.mxu0
      %v736 = vadd.f32 %v683, %v735
      %737 = vdwg.mxu0
      %738 = vst.msk [vmem:[%s283] sm:$0xff] %vm303, %v719
      %739 = vst.msk [vmem:[%s283 + $0x8] sm:$0xff] %vm303, %v721
      %740 = vst.msk [vmem:[%s283 + $0x10] sm:$0xff] %vm303, %v724
      %741 = vst.msk [vmem:[%s283 + $0x18] sm:$0xff] %vm303, %v726
      %742 = vst.msk [vmem:[%s283 + $0x20] sm:$0xff] %vm303, %v729
      %743 = vst.msk [vmem:[%s283 + $0x28] sm:$0xff] %vm303, %v731
      %744 = vst.msk [vmem:[%s283 + $0x30] sm:$0xff] %vm303, %v734
      %745 = vst.msk [vmem:[%s283 + $0x38] sm:$0xff] %vm303, %v736
      %s746 = smul.u32 8, %s18
      %p747 = scmp.lt.s32.totalorder %s746, 15
      %s748 = scalar_select %p747, %s746, 15
      %s749 = smul.addr %s748, 8
      %s750 = scalar_lea.vmem %s7, %s749
      // Predicated region
      $region49: #{patch_merging.1} parent=47 // pred_check
        %p751 = pneg %p188
      $region50: #{patch_merging.1} parent=47 // pred_check_branch
        %753 = sbr.rel (%p751) target = $region52
      $region51: #{patch_merging.1} parent=47 // pred_region
        %s754 = smul.u32 8, %s18
      $region52: #{patch_merging.1} parent=47 // pred_fallthru
        _
    $region48: #{patch_merging.1} parent=5 // pred_fallthru
      _
    %p755 = scmp.le.s32.totalorder 2, %s13
    // Predicated region
    $region53: #{patch_merging.1} parent=5 // pred_check
      %p756 = pneg %p755
    $region54: #{patch_merging.1} parent=5 // pred_check_branch
      %758 = sbr.rel (%p756) target = $region56
    $region55: #{patch_merging.1} parent=5 // pred_region
      %s759 = ssub.s32 %s13, 2
      // Predicated region
      $region57: #{patch_merging.1} parent=55 // pred_check
        %p760 = pneg %p194
      $region58: #{patch_merging.1} parent=55 // pred_check_branch
        %762 = sbr.rel (%p760) target = $region60
      $region59: #{patch_merging.1} parent=55 // pred_region
        %s763 = smul.u32 8, %s19
        %p764 = scmp.lt.s32.totalorder %s763, 15
        %s765 = scalar_select %p764, %s763, 15
        %s766 = smul.addr %s765, 8
        %s767 = scalar_lea.vmem %s7, %s766
      $region60: #{patch_merging.1} parent=55 // pred_fallthru
        _
    $region56: #{patch_merging.1} parent=5 // pred_fallthru
      _
  $region6: #{patch_merging.1} parent=0 // loop_footer
    %s17 = sadd.s32 1, %s13
  $region7: #{patch_merging.1} parent=0 // loop_footer_branch
    %12 = sbr.rel target = $region3
  $region8: #{patch_merging.1} parent=0 // loop_exit
    _

</llo_original>
